<compile_context>
chip_gen: v6e
topology: v6e:2x2x1
jax: 0.10.0
libtpu: 0.0.40
codegen_flags: <defaults>
</compile_context>

<pallas_src>
import functools

import jax
import jax.numpy as jnp
from jax.experimental import pallas as pl
from jax.experimental.pallas import tpu as pltpu


def _pick_q_tile(T):
    """Largest nice query tile that divides T (multiple of 8), else T."""
    for t in (512, 256, 128):
        if T % t == 0:
            return t
    return T


def _mha_kernel(xq_ref, xf_ref, wq_ref, bq_ref, wk_ref, bk_ref, wv_ref, bv_ref,
                wo_ref, lnw_ref, lnb_ref, out_ref, acc_ref, k_cache, v_cache,
                *, scale, eps, compute_dtype):
    qi = pl.program_id(1)
    h = pl.program_id(2)
    n_h = pl.num_programs(2)

    x_q = xq_ref[0]                                   # (Tq, D) f32 (residual)
    xq_c = x_q.astype(compute_dtype)

    # ---- start of the head reduction: seed accumulator with the residual ----
    @pl.when(h == 0)
    def _():
        acc_ref[...] = x_q

    # ---- first query tile of this (batch, head): project + cache K and V ----
    @pl.when(qi == 0)
    def _():
        xf_c = xf_ref[0].astype(compute_dtype)        # (T, D)
        k = jnp.dot(xf_c, wk_ref[0],
                    preferred_element_type=jnp.float32) + bk_ref[0]   # (T, Dh)
        v = jnp.dot(xf_c, wv_ref[0],
                    preferred_element_type=jnp.float32) + bv_ref[0]   # (T, Dh)
        k_cache[h] = k.astype(compute_dtype)
        v_cache[h] = v.astype(compute_dtype)

    k = k_cache[h]                                    # (T, Dh) compute_dtype
    v = v_cache[h]                                    # (T, Dh) compute_dtype

    # ---- per-head Q projection for this tile (MXU, f32 accumulation) ----
    q = jnp.dot(xq_c, wq_ref[0],
                preferred_element_type=jnp.float32) + bq_ref[0]       # (Tq, Dh)
    # Fold the softmax scale into Q (cheaper than scaling the (Tq, T) scores).
    q = (q * scale).astype(compute_dtype)

    # ---- scores: contract last dims of q and k (no k.T materialization) ----
    s = jax.lax.dot_general(
        q, k, dimension_numbers=(((1,), (1,)), ((), ())),
        preferred_element_type=jnp.float32)           # (Tq, T) f32

    # ---- softmax in f32 ----
    s_max = jnp.max(s, axis=-1, keepdims=True)
    p = jnp.exp(s - s_max)
    denom = jnp.sum(p, axis=-1, keepdims=True)
    p = p * pl.reciprocal(denom, approx=True)

    # ---- attention value + per-head slice of the output projection ----
    av = jnp.dot(p.astype(compute_dtype), v,
                 preferred_element_type=jnp.float32)  # (Tq, Dh)
    acc_ref[...] += jnp.dot(av.astype(compute_dtype), wo_ref[0],
                            preferred_element_type=jnp.float32)       # (Tq, D)

    # ---- finalize: LayerNorm(residual + attn_out) in f32, lane-dense write ----
    @pl.when(h == n_h - 1)
    def _():
        y = acc_ref[...]
        mean = jnp.mean(y, axis=-1, keepdims=True)
        var = jnp.mean(jnp.square(y - mean), axis=-1, keepdims=True)
        y_hat = (y - mean) * jax.lax.rsqrt(var + eps)
        out_ref[0] = (y_hat * lnw_ref[...] + lnb_ref[...]).astype(out_ref.dtype)


def multi_head_attn(inp, params, *, n_head, d_head, eps=1e-5,
                    compute_dtype=jnp.bfloat16, q_tile=None):
    """inp: (B, T, d_model) float32."""
    B, T, D = inp.shape
    hd = n_head * d_head
    scale = 1.0 / (d_head ** 0.5)

    if q_tile is None:
        q_tile = _pick_q_tile(T)
    assert T % q_tile == 0
    n_qt = T // q_tile

    # Split the packed QKV weight into per-head (H, D, Dh) slabs so the kernel
    # never slices narrow head columns out of a wide activation.
    w_qkv = params["w_qkv"]                           # (D, 3*H*Dh)
    b_qkv = params["b_qkv"]                           # (3*H*Dh,)

    def head_major_w(cols):                           # (D, H*Dh) -> (H, D, Dh)
        return cols.reshape(D, n_head, d_head).transpose(1, 0, 2)

    w_q3 = head_major_w(w_qkv[:, 0 * hd:1 * hd]).astype(compute_dtype)
    w_k3 = head_major_w(w_qkv[:, 1 * hd:2 * hd]).astype(compute_dtype)
    w_v3 = head_major_w(w_qkv[:, 2 * hd:3 * hd]).astype(compute_dtype)

    b_q3 = b_qkv[0 * hd:1 * hd].reshape(n_head, 1, d_head).astype(jnp.float32)
    b_k3 = b_qkv[1 * hd:2 * hd].reshape(n_head, 1, d_head).astype(jnp.float32)
    b_v3 = b_qkv[2 * hd:3 * hd].reshape(n_head, 1, d_head).astype(jnp.float32)

    w_o3 = params["w_o"].reshape(n_head, d_head, D).astype(compute_dtype)
    ln_w = params["ln_w"].reshape(1, D).astype(jnp.float32)
    ln_b = params["ln_b"].reshape(1, D).astype(jnp.float32)

    kernel = functools.partial(
        _mha_kernel, scale=scale, eps=eps, compute_dtype=compute_dtype)

    return pl.pallas_call(
        kernel,
        out_shape=jax.ShapeDtypeStruct((B, T, D), inp.dtype),
        grid_spec=pltpu.PrefetchScalarGridSpec(
            num_scalar_prefetch=0,
            grid=(B, n_qt, n_head),
            in_specs=[
                # query-tile rows (also the residual)
                pl.BlockSpec((1, q_tile, D), lambda b, qi, h: (b, qi, 0)),
                # full sequence for K/V projection (resident across qi, h)
                pl.BlockSpec((1, T, D), lambda b, qi, h: (b, 0, 0)),
                # per-head weights / biases (grid-invariant except along h)
                pl.BlockSpec((1, D, d_head), lambda b, qi, h: (h, 0, 0)),
                pl.BlockSpec((1, 1, d_head), lambda b, qi, h: (h, 0, 0)),
                pl.BlockSpec((1, D, d_head), lambda b, qi, h: (h, 0, 0)),
                pl.BlockSpec((1, 1, d_head), lambda b, qi, h: (h, 0, 0)),
                pl.BlockSpec((1, D, d_head), lambda b, qi, h: (h, 0, 0)),
                pl.BlockSpec((1, 1, d_head), lambda b, qi, h: (h, 0, 0)),
                pl.BlockSpec((1, d_head, D), lambda b, qi, h: (h, 0, 0)),
                # LayerNorm params (fully resident)
                pl.BlockSpec((1, D), lambda b, qi, h: (0, 0)),
                pl.BlockSpec((1, D), lambda b, qi, h: (0, 0)),
            ],
            out_specs=pl.BlockSpec((1, q_tile, D), lambda b, qi, h: (b, qi, 0)),
            scratch_shapes=[
                pltpu.VMEM((q_tile, D), jnp.float32),        # output accumulator
                pltpu.VMEM((n_head, T, d_head), compute_dtype),  # K cache
                pltpu.VMEM((n_head, T, d_head), compute_dtype),  # V cache
            ],
        ),
        compiler_params=pltpu.CompilerParams(
            # qi and h carry scratch dependencies (K/V cache, head accumulator),
            # so they must stay sequential; megacore parallelism comes from b.
            dimension_semantics=("parallel", "arbitrary", "arbitrary")),
    )(inp, inp, w_q3, b_q3, w_k3, b_k3, w_v3, b_v3, w_o3, ln_w, ln_b)


def _reference(inp, params, *, n_head, d_head, eps=1e-5):
    """Pure-JAX reference mirroring the PyTorch module (eval mode)."""
    B, T, D = inp.shape
    hd = n_head * d_head
    scale = 1.0 / (d_head ** 0.5)
    qkv = inp @ params["w_qkv"] + params["b_qkv"]
    q, k, v = jnp.split(qkv, 3, axis=2)

    def heads(x):  # (B,T,H*Dh) -> (H*B, T, Dh)
        return x.reshape(B, T, n_head, d_head).transpose(2, 0, 1, 3).reshape(-1, T, d_head)

    q, k, v = heads(q), heads(k), heads(v)
    s = jnp.einsum("btd,bsd->bts", q, k) * scale
    p = jax.nn.softmax(s, axis=2)
    av = jnp.einsum("bts,bsd->btd", p, v)
    av = av.reshape(n_head, B, T, d_head).transpose(1, 2, 0, 3).reshape(B, T, hd)
    attn_out = av @ params["w_o"]
    y = inp + attn_out
    mean = jnp.mean(y, axis=-1, keepdims=True)
    var = jnp.mean((y - mean) ** 2, axis=-1, keepdims=True)
    return (y - mean) * jax.lax.rsqrt(var + eps) * params["ln_w"] + params["ln_b"]


def _make_params(key, d_model, hd):
    k1, k2, k3 = jax.random.split(key, 3)
    return {
        "w_qkv": 0.05 * jax.random.normal(k1, (d_model, 3 * hd), dtype=jnp.float32),
        "b_qkv": 0.01 * jax.random.normal(k2, (3 * hd,), dtype=jnp.float32),
        "w_o": 0.05 * jax.random.normal(k3, (hd, d_model), dtype=jnp.float32),
        "ln_w": jnp.ones((d_model,), dtype=jnp.float32),
        "ln_b": jnp.zeros((d_model,), dtype=jnp.float32),
    }


if __name__ == "__main__":
    # Small, module-consistent shapes (NB: far below real tiles — for
    # correctness only, not performance conclusions).
    n_head, d_head, d_model = 2, 16, 32
    hd = n_head * d_head

    key = jax.random.PRNGKey(0)
    kp, kx1, kx2 = jax.random.split(key, 3)
    params = _make_params(kp, d_model, hd)

    # ---- test 1: single query tile (B=2, T=8) ----
    B, T = 2, 8
    inp = jax.random.normal(kx1, (B, T, d_model), dtype=jnp.float32)
    ref = _reference(inp, params, n_head=n_head, d_head=d_head)

    out_f32 = multi_head_attn(inp, params, n_head=n_head, d_head=d_head,
                              compute_dtype=jnp.float32)
    out_f32 = jax.block_until_ready(out_f32)
    assert out_f32.shape == (B, T, d_model)
    assert jnp.allclose(out_f32, ref, atol=5e-3, rtol=5e-3), "f32 mismatch vs reference"

    out_bf16 = multi_head_attn(inp, params, n_head=n_head, d_head=d_head,
                               compute_dtype=jnp.bfloat16)
    out_bf16 = jax.block_until_ready(out_bf16)
    assert jnp.allclose(out_bf16, ref, atol=5e-2, rtol=5e-2), "bf16 mismatch vs reference"

    # ---- test 2: multiple query tiles (exercises the K/V cache reuse path) ----
    B2, T2, q_tile2 = 2, 16, 8
    inp2 = jax.random.normal(kx2, (B2, T2, d_model), dtype=jnp.float32)
    ref2 = _reference(inp2, params, n_head=n_head, d_head=d_head)

    out2 = multi_head_attn(inp2, params, n_head=n_head, d_head=d_head,
                           compute_dtype=jnp.float32, q_tile=q_tile2)
    out2 = jax.block_until_ready(out2)
    assert out2.shape == (B2, T2, d_model)
    assert jnp.allclose(out2, ref2, atol=5e-3, rtol=5e-3), "multi-tile mismatch vs reference"

    print("KERNEL_OK")
</pallas_src>

<mosaic_0001>
module attributes {stable_mosaic.version = 11 : i64} {
  func.func @_mha_kernel(%arg0: i32, %arg1: i32, %arg2: i32, %arg3: memref<1x8x32xf32, #tpu.memory_space<vmem>>, %arg4: memref<1x8x32xf32, #tpu.memory_space<vmem>>, %arg5: memref<1x32x16xf32, #tpu.memory_space<vmem>>, %arg6: memref<1x1x16xf32, #tpu.memory_space<vmem>>, %arg7: memref<1x32x16xf32, #tpu.memory_space<vmem>>, %arg8: memref<1x1x16xf32, #tpu.memory_space<vmem>>, %arg9: memref<1x32x16xf32, #tpu.memory_space<vmem>>, %arg10: memref<1x1x16xf32, #tpu.memory_space<vmem>>, %arg11: memref<1x16x32xf32, #tpu.memory_space<vmem>>, %arg12: memref<1x32xf32, #tpu.memory_space<vmem>>, %arg13: memref<1x32xf32, #tpu.memory_space<vmem>>, %arg14: memref<1x8x32xf32, #tpu.memory_space<vmem>>, %arg15: memref<8x32xf32, #tpu.memory_space<vmem>>, %arg16: memref<2x8x16xf32, #tpu.memory_space<vmem>>, %arg17: memref<2x8x16xf32, #tpu.memory_space<vmem>>) attributes {dimension_semantics = [#tpu.dimension_semantics<parallel>, #tpu.dimension_semantics<arbitrary>, #tpu.dimension_semantics<arbitrary>], iteration_bounds = array<i64: 2, 1, 2>, scalar_prefetch = 0 : i64, scratch_operands = 3 : i64, tpu.core_type = #tpu.core_type<tc>, window_params = [{transform_indices = @transform_0, window_bounds = array<i64: 1, 8, 32>}, {transform_indices = @transform_1, window_bounds = array<i64: 1, 8, 32>}, {transform_indices = @transform_2, window_bounds = array<i64: 1, 32, 16>}, {transform_indices = @transform_3, window_bounds = array<i64: 1, 1, 16>}, {transform_indices = @transform_4, window_bounds = array<i64: 1, 32, 16>}, {transform_indices = @transform_5, window_bounds = array<i64: 1, 1, 16>}, {transform_indices = @transform_6, window_bounds = array<i64: 1, 32, 16>}, {transform_indices = @transform_7, window_bounds = array<i64: 1, 1, 16>}, {transform_indices = @transform_8, window_bounds = array<i64: 1, 16, 32>}, {pipeline_mode = #tpu.pipeline_mode<synchronous>, transform_indices = @transform_9, window_bounds = array<i64: 1, 32>}, {pipeline_mode = #tpu.pipeline_mode<synchronous>, transform_indices = @transform_10, window_bounds = array<i64: 1, 32>}, {transform_indices = @transform_11, window_bounds = array<i64: 1, 8, 32>}]} {
    %c0 = arith.constant 0 : index
    %c0_0 = arith.constant 0 : index
    %c0_1 = arith.constant 0 : index
    %0 = vector.load %arg3[%c0, %c0_0, %c0_1] : memref<1x8x32xf32, #tpu.memory_space<vmem>>, vector<1x8x32xf32>
    %1 = vector.shape_cast %0 : vector<1x8x32xf32> to vector<8x32xf32>
    %c0_i32 = arith.constant 0 : i32
    %2 = arith.cmpi eq, %arg2, %c0_i32 : i32
    %3 = arith.extui %2 : i1 to i32
    %c0_i32_2 = arith.constant 0 : i32
    %4 = arith.cmpi ne, %3, %c0_i32_2 : i32
    scf.if %4 {
      %c0_29 = arith.constant 0 : index
      %c0_30 = arith.constant 0 : index
      %44 = vector.load %arg15[%c0_29, %c0_30] : memref<8x32xf32, #tpu.memory_space<vmem>>, vector<8x32xf32>
      tpu.vector_store %arg15[%c0_29, %c0_30], %1 {strides = array<i32>} : memref<8x32xf32, #tpu.memory_space<vmem>>, vector<8x32xf32>,
    } else {
    }
    %c0_i32_3 = arith.constant 0 : i32
    %5 = arith.cmpi eq, %arg1, %c0_i32_3 : i32
    %6 = arith.extui %5 : i1 to i32
    %c0_i32_4 = arith.constant 0 : i32
    %7 = arith.cmpi ne, %6, %c0_i32_4 : i32
    scf.if %7 {
      %c0_29 = arith.constant 0 : index
      %c0_30 = arith.constant 0 : index
      %c0_31 = arith.constant 0 : index
      %44 = vector.load %arg4[%c0_29, %c0_30, %c0_31] : memref<1x8x32xf32, #tpu.memory_space<vmem>>, vector<1x8x32xf32>
      %45 = vector.shape_cast %44 : vector<1x8x32xf32> to vector<8x32xf32>
      %c0_32 = arith.constant 0 : index
      %c0_33 = arith.constant 0 : index
      %c0_34 = arith.constant 0 : index
      %46 = vector.load %arg7[%c0_32, %c0_33, %c0_34] : memref<1x32x16xf32, #tpu.memory_space<vmem>>, vector<1x32x16xf32>
      %47 = vector.shape_cast %46 : vector<1x32x16xf32> to vector<32x16xf32>
      %cst_35 = arith.constant dense<0.000000e+00> : vector<8x16xf32>
      %48 = tpu.matmul %45, %47, %cst_35 {dimension_numbers = #tpu.dot_dimension_numbers<[1], [0], [0], [1], [0, 0, 1, 1], [], []>} : vector<8x32xf32>, vector<32x16xf32>, vector<8x16xf32> -> vector<8x16xf32>
      %c0_36 = arith.constant 0 : index
      %c0_37 = arith.constant 0 : index
      %c0_38 = arith.constant 0 : index
      %49 = vector.load %arg8[%c0_36, %c0_37, %c0_38] : memref<1x1x16xf32, #tpu.memory_space<vmem>>, vector<1x1x16xf32>
      %50 = vector.shape_cast %49 : vector<1x1x16xf32> to vector<1x16xf32>
      %51 = vector.broadcast %50 : vector<1x16xf32> to vector<8x16xf32>
      %52 = arith.addf %48, %51 : vector<8x16xf32>
      %c0_39 = arith.constant 0 : index
      %c0_40 = arith.constant 0 : index
      %c0_41 = arith.constant 0 : index
      %53 = vector.load %arg9[%c0_39, %c0_40, %c0_41] : memref<1x32x16xf32, #tpu.memory_space<vmem>>, vector<1x32x16xf32>
      %54 = vector.shape_cast %53 : vector<1x32x16xf32> to vector<32x16xf32>
      %cst_42 = arith.constant dense<0.000000e+00> : vector<8x16xf32>
      %55 = tpu.matmul %45, %54, %cst_42 {dimension_numbers = #tpu.dot_dimension_numbers<[1], [0], [0], [1], [0, 0, 1, 1], [], []>} : vector<8x32xf32>, vector<32x16xf32>, vector<8x16xf32> -> vector<8x16xf32>
      %c0_43 = arith.constant 0 : index
      %c0_44 = arith.constant 0 : index
      %c0_45 = arith.constant 0 : index
      %56 = vector.load %arg10[%c0_43, %c0_44, %c0_45] : memref<1x1x16xf32, #tpu.memory_space<vmem>>, vector<1x1x16xf32>
      %57 = vector.shape_cast %56 : vector<1x1x16xf32> to vector<1x16xf32>
      %58 = vector.broadcast %57 : vector<1x16xf32> to vector<8x16xf32>
      %59 = arith.addf %55, %58 : vector<8x16xf32>
      %60 = arith.index_cast %arg2 : i32 to index
      %c0_46 = arith.constant 0 : index
      %c0_47 = arith.constant 0 : index
      %61 = vector.load %arg16[%60, %c0_46, %c0_47] : memref<2x8x16xf32, #tpu.memory_space<vmem>>, vector<1x8x16xf32>
      %62 = vector.shape_cast %61 : vector<1x8x16xf32> to vector<8x16xf32>
      %63 = vector.shape_cast %52 : vector<8x16xf32> to vector<1x8x16xf32>
      tpu.vector_store %arg16[%60, %c0_46, %c0_47], %63 {strides = array<i32>} : memref<2x8x16xf32, #tpu.memory_space<vmem>>, vector<1x8x16xf32>,
      %64 = arith.index_cast %arg2 : i32 to index
      %c0_48 = arith.constant 0 : index
      %c0_49 = arith.constant 0 : index
      %65 = vector.load %arg17[%64, %c0_48, %c0_49] : memref<2x8x16xf32, #tpu.memory_space<vmem>>, vector<1x8x16xf32>
      %66 = vector.shape_cast %65 : vector<1x8x16xf32> to vector<8x16xf32>
      %67 = vector.shape_cast %59 : vector<8x16xf32> to vector<1x8x16xf32>
      tpu.vector_store %arg17[%64, %c0_48, %c0_49], %67 {strides = array<i32>} : memref<2x8x16xf32, #tpu.memory_space<vmem>>, vector<1x8x16xf32>,
    } else {
    }
    %8 = arith.index_cast %arg2 : i32 to index
    %c0_5 = arith.constant 0 : index
    %c0_6 = arith.constant 0 : index
    %9 = vector.load %arg16[%8, %c0_5, %c0_6] : memref<2x8x16xf32, #tpu.memory_space<vmem>>, vector<1x8x16xf32>
    %10 = vector.shape_cast %9 : vector<1x8x16xf32> to vector<8x16xf32>
    %11 = arith.index_cast %arg2 : i32 to index
    %c0_7 = arith.constant 0 : index
    %c0_8 = arith.constant 0 : index
    %12 = vector.load %arg17[%11, %c0_7, %c0_8] : memref<2x8x16xf32, #tpu.memory_space<vmem>>, vector<1x8x16xf32>
    %13 = vector.shape_cast %12 : vector<1x8x16xf32> to vector<8x16xf32>
    %c0_9 = arith.constant 0 : index
    %c0_10 = arith.constant 0 : index
    %c0_11 = arith.constant 0 : index
    %14 = vector.load %arg5[%c0_9, %c0_10, %c0_11] : memref<1x32x16xf32, #tpu.memory_space<vmem>>, vector<1x32x16xf32>
    %15 = vector.shape_cast %14 : vector<1x32x16xf32> to vector<32x16xf32>
    %cst = arith.constant dense<0.000000e+00> : vector<8x16xf32>
    %16 = tpu.matmul %1, %15, %cst {dimension_numbers = #tpu.dot_dimension_numbers<[1], [0], [0], [1], [0, 0, 1, 1], [], []>} : vector<8x32xf32>, vector<32x16xf32>, vector<8x16xf32> -> vector<8x16xf32>
    %c0_12 = arith.constant 0 : index
    %c0_13 = arith.constant 0 : index
    %c0_14 = arith.constant 0 : index
    %17 = vector.load %arg6[%c0_12, %c0_13, %c0_14] : memref<1x1x16xf32, #tpu.memory_space<vmem>>, vector<1x1x16xf32>
    %18 = vector.shape_cast %17 : vector<1x1x16xf32> to vector<1x16xf32>
    %19 = vector.broadcast %18 : vector<1x16xf32> to vector<8x16xf32>
    %20 = arith.addf %16, %19 : vector<8x16xf32>
    %cst_15 = arith.constant 2.500000e-01 : f32
    %21 = vector.broadcast %cst_15 : f32 to vector<8x16xf32>
    %22 = arith.mulf %20, %21 : vector<8x16xf32>
    %cst_16 = arith.constant dense<0.000000e+00> : vector<8x8xf32>
    %23 = tpu.matmul %22, %10, %cst_16 {dimension_numbers = #tpu.dot_dimension_numbers<[1], [1], [0], [0], [0, 0, 1, 0], [], []>} : vector<8x16xf32>, vector<8x16xf32>, vector<8x8xf32> -> vector<8x8xf32>
    %cst_17 = arith.constant dense<0xFF800000> : vector<8xf32>
    %24 = vector.multi_reduction <maximumf>, %23, %cst_17 [1] : vector<8x8xf32> to vector<8xf32>
    %25 = vector.shape_cast %24 : vector<8xf32> to vector<8x1xf32>
    %26 = vector.broadcast %25 : vector<8x1xf32> to vector<8x8xf32>
    %27 = arith.subf %23, %26 : vector<8x8xf32>
    %28 = math.exp %27 : vector<8x8xf32>
    %cst_18 = arith.constant dense<0.000000e+00> : vector<8xf32>
    %29 = vector.multi_reduction <add>, %28, %cst_18 [1] : vector<8x8xf32> to vector<8xf32>
    %30 = vector.shape_cast %29 : vector<8xf32> to vector<8x1xf32>
    %31 = tpu.reciprocal %30 {approx = true} : vector<8x1xf32> -> vector<8x1xf32>
    %32 = vector.broadcast %31 : vector<8x1xf32> to vector<8x8xf32>
    %33 = arith.mulf %28, %32 : vector<8x8xf32>
    %cst_19 = arith.constant dense<0.000000e+00> : vector<8x16xf32>
    %34 = tpu.matmul %33, %13, %cst_19 {dimension_numbers = #tpu.dot_dimension_numbers<[1], [0], [0], [1], [0, 0, 1, 1], [], []>} : vector<8x8xf32>, vector<8x16xf32>, vector<8x16xf32> -> vector<8x16xf32>
    %c0_20 = arith.constant 0 : index
    %c0_21 = arith.constant 0 : index
    %35 = vector.load %arg15[%c0_20, %c0_21] : memref<8x32xf32, #tpu.memory_space<vmem>>, vector<8x32xf32>
    %c0_22 = arith.constant 0 : index
    %c0_23 = arith.constant 0 : index
    %c0_24 = arith.constant 0 : index
    %36 = vector.load %arg11[%c0_22, %c0_23, %c0_24] : memref<1x16x32xf32, #tpu.memory_space<vmem>>, vector<1x16x32xf32>
    %37 = vector.shape_cast %36 : vector<1x16x32xf32> to vector<16x32xf32>
    %cst_25 = arith.constant dense<0.000000e+00> : vector<8x32xf32>
    %38 = tpu.matmul %34, %37, %cst_25 {dimension_numbers = #tpu.dot_dimension_numbers<[1], [0], [0], [1], [0, 0, 1, 1], [], []>} : vector<8x16xf32>, vector<16x32xf32>, vector<8x32xf32> -> vector<8x32xf32>
    %39 = arith.addf %35, %38 : vector<8x32xf32>
    %c0_26 = arith.constant 0 : index
    %c0_27 = arith.constant 0 : index
    %40 = vector.load %arg15[%c0_26, %c0_27] : memref<8x32xf32, #tpu.memory_space<vmem>>, vector<8x32xf32>
    tpu.vector_store %arg15[%c0_26, %c0_27], %39 {strides = array<i32>} : memref<8x32xf32, #tpu.memory_space<vmem>>, vector<8x32xf32>,
    %c1_i32 = arith.constant 1 : i32
    %41 = arith.cmpi eq, %arg2, %c1_i32 : i32
    %42 = arith.extui %41 : i1 to i32
    %c0_i32_28 = arith.constant 0 : i32
    %43 = arith.cmpi ne, %42, %c0_i32_28 : i32
    scf.if %43 {
      %c0_29 = arith.constant 0 : index
      %c0_30 = arith.constant 0 : index
      %44 = vector.load %arg15[%c0_29, %c0_30] : memref<8x32xf32, #tpu.memory_space<vmem>>, vector<8x32xf32>
      %cst_31 = arith.constant dense<0.000000e+00> : vector<8xf32>
      %45 = vector.multi_reduction <add>, %44, %cst_31 [1] : vector<8x32xf32> to vector<8xf32>
      %46 = vector.shape_cast %45 : vector<8xf32> to vector<8x1xf32>
      %cst_32 = arith.constant 3.200000e+01 : f32
      %47 = vector.broadcast %cst_32 : f32 to vector<8x1xf32>
      %48 = arith.divf %46, %47 : vector<8x1xf32>
      %49 = vector.broadcast %48 : vector<8x1xf32> to vector<8x32xf32>
      %50 = arith.subf %44, %49 : vector<8x32xf32>
      %51 = arith.mulf %50, %50 : vector<8x32xf32>
      %cst_33 = arith.constant dense<0.000000e+00> : vector<8xf32>
      %52 = vector.multi_reduction <add>, %51, %cst_33 [1] : vector<8x32xf32> to vector<8xf32>
      %53 = vector.shape_cast %52 : vector<8xf32> to vector<8x1xf32>
      %cst_34 = arith.constant 3.200000e+01 : f32
      %54 = vector.broadcast %cst_34 : f32 to vector<8x1xf32>
      %55 = arith.divf %53, %54 : vector<8x1xf32>
      %56 = vector.broadcast %48 : vector<8x1xf32> to vector<8x32xf32>
      %57 = arith.subf %44, %56 : vector<8x32xf32>
      %cst_35 = arith.constant 9.99999974E-6 : f32
      %58 = vector.broadcast %cst_35 : f32 to vector<8x1xf32>
      %59 = arith.addf %55, %58 : vector<8x1xf32>
      %60 = math.rsqrt %59 : vector<8x1xf32>
      %61 = vector.broadcast %60 : vector<8x1xf32> to vector<8x32xf32>
      %62 = arith.mulf %57, %61 : vector<8x32xf32>
      %c0_36 = arith.constant 0 : index
      %c0_37 = arith.constant 0 : index
      %63 = vector.load %arg12[%c0_36, %c0_37] : memref<1x32xf32, #tpu.memory_space<vmem>>, vector<1x32xf32>
      %64 = vector.broadcast %63 : vector<1x32xf32> to vector<8x32xf32>
      %65 = arith.mulf %62, %64 : vector<8x32xf32>
      %c0_38 = arith.constant 0 : index
      %c0_39 = arith.constant 0 : index
      %66 = vector.load %arg13[%c0_38, %c0_39] : memref<1x32xf32, #tpu.memory_space<vmem>>, vector<1x32xf32>
      %67 = vector.broadcast %66 : vector<1x32xf32> to vector<8x32xf32>
      %68 = arith.addf %65, %67 : vector<8x32xf32>
      %c0_40 = arith.constant 0 : index
      %c0_41 = arith.constant 0 : index
      %c0_42 = arith.constant 0 : index
      %69 = vector.load %arg14[%c0_40, %c0_41, %c0_42] : memref<1x8x32xf32, #tpu.memory_space<vmem>>, vector<1x8x32xf32>
      %70 = vector.shape_cast %69 : vector<1x8x32xf32> to vector<8x32xf32>
      %71 = vector.shape_cast %68 : vector<8x32xf32> to vector<1x8x32xf32>
      tpu.vector_store %arg14[%c0_40, %c0_41, %c0_42], %71 {strides = array<i32>} : memref<1x8x32xf32, #tpu.memory_space<vmem>>, vector<1x8x32xf32>,
    } else {
    }
    return
  }
  func.func @transform_0(%arg0: i32, %arg1: i32, %arg2: i32) -> (i32, i32, i32) {
    %c0_i32 = arith.constant 0 : i32
    %c0_i32_0 = arith.constant 0 : i32
    return %arg0, %arg1, %c0_i32 : i32, i32, i32
  }
  func.func @transform_1(%arg0: i32, %arg1: i32, %arg2: i32) -> (i32, i32, i32) {
    %c0_i32 = arith.constant 0 : i32
    %c0_i32_0 = arith.constant 0 : i32
    %c0_i32_1 = arith.constant 0 : i32
    return %arg0, %c0_i32, %c0_i32_0 : i32, i32, i32
  }
  func.func @transform_2(%arg0: i32, %arg1: i32, %arg2: i32) -> (i32, i32, i32) {
    %c0_i32 = arith.constant 0 : i32
    %c0_i32_0 = arith.constant 0 : i32
    %c0_i32_1 = arith.constant 0 : i32
    return %arg2, %c0_i32, %c0_i32_0 : i32, i32, i32
  }
  func.func @transform_3(%arg0: i32, %arg1: i32, %arg2: i32) -> (i32, i32, i32) {
    %c0_i32 = arith.constant 0 : i32
    %c0_i32_0 = arith.constant 0 : i32
    %c0_i32_1 = arith.constant 0 : i32
    return %arg2, %c0_i32, %c0_i32_0 : i32, i32, i32
  }
  func.func @transform_4(%arg0: i32, %arg1: i32, %arg2: i32) -> (i32, i32, i32) {
    %c0_i32 = arith.constant 0 : i32
    %c0_i32_0 = arith.constant 0 : i32
    %c0_i32_1 = arith.constant 0 : i32
    return %arg2, %c0_i32, %c0_i32_0 : i32, i32, i32
  }
  func.func @transform_5(%arg0: i32, %arg1: i32, %arg2: i32) -> (i32, i32, i32) {
    %c0_i32 = arith.constant 0 : i32
    %c0_i32_0 = arith.constant 0 : i32
    %c0_i32_1 = arith.constant 0 : i32
    return %arg2, %c0_i32, %c0_i32_0 : i32, i32, i32
  }
  func.func @transform_6(%arg0: i32, %arg1: i32, %arg2: i32) -> (i32, i32, i32) {
    %c0_i32 = arith.constant 0 : i32
    %c0_i32_0 = arith.constant 0 : i32
    %c0_i32_1 = arith.constant 0 : i32
    return %arg2, %c0_i32, %c0_i32_0 : i32, i32, i32
  }
  func.func @transform_7(%arg0: i32, %arg1: i32, %arg2: i32) -> (i32, i32, i32) {
    %c0_i32 = arith.constant 0 : i32
    %c0_i32_0 = arith.constant 0 : i32
    %c0_i32_1 = arith.constant 0 : i32
    return %arg2, %c0_i32, %c0_i32_0 : i32, i32, i32
  }
  func.func @transform_8(%arg0: i32, %arg1: i32, %arg2: i32) -> (i32, i32, i32) {
    %c0_i32 = arith.constant 0 : i32
    %c0_i32_0 = arith.constant 0 : i32
    %c0_i32_1 = arith.constant 0 : i32
    return %arg2, %c0_i32, %c0_i32_0 : i32, i32, i32
  }
  func.func @transform_9(%arg0: i32, %arg1: i32, %arg2: i32) -> (i32, i32) {
    %c0_i32 = arith.constant 0 : i32
    %c0_i32_0 = arith.constant 0 : i32
    %c0_i32_1 = arith.constant 0 : i32
    return %c0_i32, %c0_i32_0 : i32, i32
  }
  func.func @transform_10(%arg0: i32, %arg1: i32, %arg2: i32) -> (i32, i32) {
    %c0_i32 = arith.constant 0 : i32
    %c0_i32_0 = arith.constant 0 : i32
    %c0_i32_1 = arith.constant 0 : i32
    return %c0_i32, %c0_i32_0 : i32, i32
  }
  func.func @transform_11(%arg0: i32, %arg1: i32, %arg2: i32) -> (i32, i32, i32) {
    %c0_i32 = arith.constant 0 : i32
    %c0_i32_0 = arith.constant 0 : i32
    return %arg0, %arg1, %c0_i32 : i32, i32, i32
  }
}

</mosaic_0001>

<llo_original>
// kernel: tpu_custom_call.1
$region0: #{tpu_custom_call.1}
  #allocation0 [shape = 'u32[]', space=smem, size = 0x4, offset = 0x4, fixed_abs, tag = 'smem constant byte address 0x4 - core index']
  #allocation1 [shape = 'u32[144,128]{1,0:T(1,128)}', space=vmem, size = 0x12000, scoped, tag = 'internal scratch']
  #allocation2 [shape = 'f32[8,32]{1,0:T(8,128)}', space=vmem, size = 0x1000, scoped, tag = 'scratch operand']
  #allocation3 [shape = 'f32[2,8,16]{2,1,0:T(8,128)}', space=vmem, size = 0x2000, scoped, tag = 'scratch operand']
  #allocation4 [shape = 'f32[2,8,16]{2,1,0:T(8,128)}', space=vmem, size = 0x2000, scoped, tag = 'scratch operand']
  %s0 = inlined_call_operand.vmem [shape: f32[2,8,32], index: 0, kind: input, shape index: {}]
  %s1 = inlined_call_operand.vmem [shape: f32[2,8,32], index: 1, kind: input, shape index: {}]
  %s2 = inlined_call_operand.vmem [shape: f32[2,32,16], index: 2, kind: input, shape index: {}]
  %s3 = inlined_call_operand.vmem [shape: f32[2,1,16], index: 3, kind: input, shape index: {}]
  %s4 = inlined_call_operand.vmem [shape: f32[2,32,16], index: 4, kind: input, shape index: {}]
  %s5 = inlined_call_operand.vmem [shape: f32[2,1,16], index: 5, kind: input, shape index: {}]
  %s6 = inlined_call_operand.vmem [shape: f32[2,32,16], index: 6, kind: input, shape index: {}]
  %s7 = inlined_call_operand.vmem [shape: f32[2,1,16], index: 7, kind: input, shape index: {}]
  %s8 = inlined_call_operand.vmem [shape: f32[2,16,32], index: 8, kind: input, shape index: {}]
  %s9 = inlined_call_operand.vmem [shape: f32[1,32], index: 9, kind: input, shape index: {}]
  %s10 = inlined_call_operand.vmem [shape: f32[1,32], index: 10, kind: input, shape index: {}]
  %s11 = inlined_call_operand.hbm [shape: f32[2,8,32], index: 11, kind: output, shape index: {}]
  %s12 = sld [smem:[#allocation0]]
  $region89: #{tpu_custom_call.1} parent=0
    _
  %s14 = ssub.s32 1, %s12
  %s15 = scalar_select 0, %s14, %s12
  $region1: #{tpu_custom_call.1} parent=0
    #allocation5 [shape = 'u8[8192]{0}', space=vmem, size = 0x2000, scoped, tag = 'output window, operand 0']
    #allocation6 [shape = 's32[2]{0}', space=sflag, size = 0x8, scoped, tag = 'scoped memory for tpu_custom_call.1']
    %16 = vsyncpa [#allocation6], 0
    %s17 = scalar_lea.sflag [#allocation6], 1
    %18 = vsyncpa %s17, 0
    loop: start=0, step=1, limit=6
    $region2: #{tpu_custom_call.1} parent=1 // loop_pre_header
      _
    $region3: #{tpu_custom_call.1} parent=1 // loop_header
      %s20 = sphi 0, %s24
      %p21 = scmp.ge.s32.totalorder %s20, 6
      %s27 = sphi 0, %s46
      %s28 = sphi 0, %s42
      %s29 = sphi 0, %s38
      %s30 = sphi 0, %s27
      %s31 = sphi 0, %s28
      %s32 = sphi 0, %s29
      %s33 = sphi 0, %s30
      %s34 = sphi 0, %s31
      %s35 = sphi 0, %s32
      %s51 = sphi 0, %s53
      %s54 = sphi 0, %s51
      %s55 = sphi 0, %s54
      %s71 = sphi 0, %s55
      %s77 = sphi 0, %s79
      %s80 = sphi 0, %s77
      %s81 = sphi 0, %s80
      %s97 = sphi 0, %s81
      %s103 = sphi 0, %s105
      %s106 = sphi 0, %s103
      %s107 = sphi 0, %s106
      %s123 = sphi 0, %s107
      %s129 = sphi 0, %s131
      %s132 = sphi 0, %s129
      %s133 = sphi 0, %s132
      %s149 = sphi 0, %s133
      %s155 = sphi 0, %s157
      %s158 = sphi 0, %s155
      %s159 = sphi 0, %s158
      %s175 = sphi 0, %s159
      %s181 = sphi 0, %s183
      %s184 = sphi 0, %s181
      %s185 = sphi 0, %s184
      %s201 = sphi 0, %s185
      %s207 = sphi 0, %s209
      %s210 = sphi 0, %s207
      %s211 = sphi 0, %s210
      %s227 = sphi 0, %s211
      %s233 = sphi 0, %s235
      %s236 = sphi 0, %s233
      %s237 = sphi 0, %s236
      %s253 = sphi 0, %s237
      %s259 = sphi 0, %s261
      %s262 = sphi 0, %s259
      %s263 = sphi 0, %s262
      %s279 = sphi 0, %s263
      %s283 = sphi 0, %s283
      %s285 = sphi 0, %s283
      %s286 = sphi 0, %s285
      %s300 = sphi 0, %s286
      %s304 = sphi 0, %s304
      %s306 = sphi 0, %s304
      %s307 = sphi 0, %s306
      %s321 = sphi 0, %s307
      %s329 = sphi 0, %s331
      %s332 = sphi 0, %s329
      %s333 = sphi 0, %s332
      %s349 = sphi 0, %s333
    $region4: #{tpu_custom_call.1} parent=1 // loop_header_branch
      %23 = sbr.rel (%p21) target = $region8
    $region5: #{tpu_custom_call.1} parent=1 // loop_body
      %s25 = ssub.s32 %s20, 1
      %s26 = ssub.s32 %s20, 2
      %s36 = sadd.s32 1, %s29
      %p37 = scmp.ge.s32.totalorder %s36, 2
      %s38 = scalar_select %p37, 0, %s36
      %s39 = sadd.s32 1, %s28
      %s40 = scalar_select %p37, %s39, %s28
      %p41 = scmp.ge.s32.totalorder %s40, 1
      %s42 = scalar_select %p41, 0, %s40
      %s43 = sadd.s32 1, %s27
      %s44 = scalar_select %p41, %s43, %s27
      %p45 = scmp.ge.s32.totalorder %s44, 2
      %s46 = scalar_select %p45, 0, %s44
      %s47 = ssub.s32 %s27, %s46
      %s48 = ssub.s32 %s28, %s42
      %s49 = sor.u32 %s47, %s48
      %p50 = scmp.eq.s32.totalorder %s49, 0
      %s52 = sadd.s32 %s51, 1
      %s53 = scalar_select %p50, %s51, %s52
      %p56 = pneg %p50
      %p57 = scmp.eq.s32.totalorder %s20, 3
      %p58 = por %p56, %p57
      %p59 = scmp.ne.s32.totalorder %s51, %s54
      %p60 = scmp.eq.s32.totalorder %s20, 0
      %p61 = por %p59, %p60
      %p62 = scmp.ne.s32.totalorder %s51, %s54
      %p63 = scmp.eq.s32.totalorder %s25, 3
      %p64 = por %p62, %p63
      %p65 = scmp.ne.s32.totalorder %s54, %s55
      %p66 = scmp.eq.s32.totalorder %s25, 0
      %p67 = por %p65, %p66
      %p68 = scmp.ne.s32.totalorder %s54, %s55
      %p69 = scmp.eq.s32.totalorder %s26, 3
      %p70 = por %p68, %p69
      %p72 = scmp.ne.s32.totalorder %s55, %s71
      %p73 = scmp.eq.s32.totalorder %s26, 0
      %p74 = por %p72, %p73
      %s75 = ssub.s32 %s27, %s46
      %p76 = scmp.eq.s32.totalorder %s75, 0
      %s78 = sadd.s32 %s77, 1
      %s79 = scalar_select %p76, %s77, %s78
      %p82 = pneg %p76
      %p83 = scmp.eq.s32.totalorder %s20, 3
      %p84 = por %p82, %p83
      %p85 = scmp.ne.s32.totalorder %s77, %s80
      %p86 = scmp.eq.s32.totalorder %s20, 0
      %p87 = por %p85, %p86
      %p88 = scmp.ne.s32.totalorder %s77, %s80
      %p89 = scmp.eq.s32.totalorder %s25, 3
      %p90 = por %p88, %p89
      %p91 = scmp.ne.s32.totalorder %s80, %s81
      %p92 = scmp.eq.s32.totalorder %s25, 0
      %p93 = por %p91, %p92
      %p94 = scmp.ne.s32.totalorder %s80, %s81
      %p95 = scmp.eq.s32.totalorder %s26, 3
      %p96 = por %p94, %p95
      %p98 = scmp.ne.s32.totalorder %s81, %s97
      %p99 = scmp.eq.s32.totalorder %s26, 0
      %p100 = por %p98, %p99
      %s101 = ssub.s32 %s29, %s38
      %p102 = scmp.eq.s32.totalorder %s101, 0
      %s104 = sadd.s32 %s103, 1
      %s105 = scalar_select %p102, %s103, %s104
      %p108 = pneg %p102
      %p109 = scmp.eq.s32.totalorder %s20, 3
      %p110 = por %p108, %p109
      %p111 = scmp.ne.s32.totalorder %s103, %s106
      %p112 = scmp.eq.s32.totalorder %s20, 0
      %p113 = por %p111, %p112
      %p114 = scmp.ne.s32.totalorder %s103, %s106
      %p115 = scmp.eq.s32.totalorder %s25, 3
      %p116 = por %p114, %p115
      %p117 = scmp.ne.s32.totalorder %s106, %s107
      %p118 = scmp.eq.s32.totalorder %s25, 0
      %p119 = por %p117, %p118
      %p120 = scmp.ne.s32.totalorder %s106, %s107
      %p121 = scmp.eq.s32.totalorder %s26, 3
      %p122 = por %p120, %p121
      %p124 = scmp.ne.s32.totalorder %s107, %s123
      %p125 = scmp.eq.s32.totalorder %s26, 0
      %p126 = por %p124, %p125
      %s127 = ssub.s32 %s29, %s38
      %p128 = scmp.eq.s32.totalorder %s127, 0
      %s130 = sadd.s32 %s129, 1
      %s131 = scalar_select %p128, %s129, %s130
      %p134 = pneg %p128
      %p135 = scmp.eq.s32.totalorder %s20, 3
      %p136 = por %p134, %p135
      %p137 = scmp.ne.s32.totalorder %s129, %s132
      %p138 = scmp.eq.s32.totalorder %s20, 0
      %p139 = por %p137, %p138
      %p140 = scmp.ne.s32.totalorder %s129, %s132
      %p141 = scmp.eq.s32.totalorder %s25, 3
      %p142 = por %p140, %p141
      %p143 = scmp.ne.s32.totalorder %s132, %s133
      %p144 = scmp.eq.s32.totalorder %s25, 0
      %p145 = por %p143, %p144
      %p146 = scmp.ne.s32.totalorder %s132, %s133
      %p147 = scmp.eq.s32.totalorder %s26, 3
      %p148 = por %p146, %p147
      %p150 = scmp.ne.s32.totalorder %s133, %s149
      %p151 = scmp.eq.s32.totalorder %s26, 0
      %p152 = por %p150, %p151
      %s153 = ssub.s32 %s29, %s38
      %p154 = scmp.eq.s32.totalorder %s153, 0
      %s156 = sadd.s32 %s155, 1
      %s157 = scalar_select %p154, %s155, %s156
      %p160 = pneg %p154
      %p161 = scmp.eq.s32.totalorder %s20, 3
      %p162 = por %p160, %p161
      %p163 = scmp.ne.s32.totalorder %s155, %s158
      %p164 = scmp.eq.s32.totalorder %s20, 0
      %p165 = por %p163, %p164
      %p166 = scmp.ne.s32.totalorder %s155, %s158
      %p167 = scmp.eq.s32.totalorder %s25, 3
      %p168 = por %p166, %p167
      %p169 = scmp.ne.s32.totalorder %s158, %s159
      %p170 = scmp.eq.s32.totalorder %s25, 0
      %p171 = por %p169, %p170
      %p172 = scmp.ne.s32.totalorder %s158, %s159
      %p173 = scmp.eq.s32.totalorder %s26, 3
      %p174 = por %p172, %p173
      %p176 = scmp.ne.s32.totalorder %s159, %s175
      %p177 = scmp.eq.s32.totalorder %s26, 0
      %p178 = por %p176, %p177
      %s179 = ssub.s32 %s29, %s38
      %p180 = scmp.eq.s32.totalorder %s179, 0
      %s182 = sadd.s32 %s181, 1
      %s183 = scalar_select %p180, %s181, %s182
      %p186 = pneg %p180
      %p187 = scmp.eq.s32.totalorder %s20, 3
      %p188 = por %p186, %p187
      %p189 = scmp.ne.s32.totalorder %s181, %s184
      %p190 = scmp.eq.s32.totalorder %s20, 0
      %p191 = por %p189, %p190
      %p192 = scmp.ne.s32.totalorder %s181, %s184
      %p193 = scmp.eq.s32.totalorder %s25, 3
      %p194 = por %p192, %p193
      %p195 = scmp.ne.s32.totalorder %s184, %s185
      %p196 = scmp.eq.s32.totalorder %s25, 0
      %p197 = por %p195, %p196
      %p198 = scmp.ne.s32.totalorder %s184, %s185
      %p199 = scmp.eq.s32.totalorder %s26, 3
      %p200 = por %p198, %p199
      %p202 = scmp.ne.s32.totalorder %s185, %s201
      %p203 = scmp.eq.s32.totalorder %s26, 0
      %p204 = por %p202, %p203
      %s205 = ssub.s32 %s29, %s38
      %p206 = scmp.eq.s32.totalorder %s205, 0
      %s208 = sadd.s32 %s207, 1
      %s209 = scalar_select %p206, %s207, %s208
      %p212 = pneg %p206
      %p213 = scmp.eq.s32.totalorder %s20, 3
      %p214 = por %p212, %p213
      %p215 = scmp.ne.s32.totalorder %s207, %s210
      %p216 = scmp.eq.s32.totalorder %s20, 0
      %p217 = por %p215, %p216
      %p218 = scmp.ne.s32.totalorder %s207, %s210
      %p219 = scmp.eq.s32.totalorder %s25, 3
      %p220 = por %p218, %p219
      %p221 = scmp.ne.s32.totalorder %s210, %s211
      %p222 = scmp.eq.s32.totalorder %s25, 0
      %p223 = por %p221, %p222
      %p224 = scmp.ne.s32.totalorder %s210, %s211
      %p225 = scmp.eq.s32.totalorder %s26, 3
      %p226 = por %p224, %p225
      %p228 = scmp.ne.s32.totalorder %s211, %s227
      %p229 = scmp.eq.s32.totalorder %s26, 0
      %p230 = por %p228, %p229
      %s231 = ssub.s32 %s29, %s38
      %p232 = scmp.eq.s32.totalorder %s231, 0
      %s234 = sadd.s32 %s233, 1
      %s235 = scalar_select %p232, %s233, %s234
      %p238 = pneg %p232
      %p239 = scmp.eq.s32.totalorder %s20, 3
      %p240 = por %p238, %p239
      %p241 = scmp.ne.s32.totalorder %s233, %s236
      %p242 = scmp.eq.s32.totalorder %s20, 0
      %p243 = por %p241, %p242
      %p244 = scmp.ne.s32.totalorder %s233, %s236
      %p245 = scmp.eq.s32.totalorder %s25, 3
      %p246 = por %p244, %p245
      %p247 = scmp.ne.s32.totalorder %s236, %s237
      %p248 = scmp.eq.s32.totalorder %s25, 0
      %p249 = por %p247, %p248
      %p250 = scmp.ne.s32.totalorder %s236, %s237
      %p251 = scmp.eq.s32.totalorder %s26, 3
      %p252 = por %p250, %p251
      %p254 = scmp.ne.s32.totalorder %s237, %s253
      %p255 = scmp.eq.s32.totalorder %s26, 0
      %p256 = por %p254, %p255
      %s257 = ssub.s32 %s29, %s38
      %p258 = scmp.eq.s32.totalorder %s257, 0
      %s260 = sadd.s32 %s259, 1
      %s261 = scalar_select %p258, %s259, %s260
      %p264 = pneg %p258
      %p265 = scmp.eq.s32.totalorder %s20, 3
      %p266 = por %p264, %p265
      %p267 = scmp.ne.s32.totalorder %s259, %s262
      %p268 = scmp.eq.s32.totalorder %s20, 0
      %p269 = por %p267, %p268
      %p270 = scmp.ne.s32.totalorder %s259, %s262
      %p271 = scmp.eq.s32.totalorder %s25, 3
      %p272 = por %p270, %p271
      %p273 = scmp.ne.s32.totalorder %s262, %s263
      %p274 = scmp.eq.s32.totalorder %s25, 0
      %p275 = por %p273, %p274
      %p276 = scmp.ne.s32.totalorder %s262, %s263
      %p277 = scmp.eq.s32.totalorder %s26, 3
      %p278 = por %p276, %p277
      %p280 = scmp.ne.s32.totalorder %s263, %s279
      %p281 = scmp.eq.s32.totalorder %s26, 0
      %p282 = por %p280, %p281
      %s284 = sadd.s32 %s283, 1
      %p287 = scmp.eq.s32.totalorder %s20, 3
      %p288 = scmp.ne.s32.totalorder %s283, %s285
      %p289 = scmp.eq.s32.totalorder %s20, 0
      %p290 = por %p288, %p289
      %p291 = scmp.ne.s32.totalorder %s283, %s285
      %p292 = scmp.eq.s32.totalorder %s25, 3
      %p293 = por %p291, %p292
      %p294 = scmp.ne.s32.totalorder %s285, %s286
      %p295 = scmp.eq.s32.totalorder %s25, 0
      %p296 = por %p294, %p295
      %p297 = scmp.ne.s32.totalorder %s285, %s286
      %p298 = scmp.eq.s32.totalorder %s26, 3
      %p299 = por %p297, %p298
      %p301 = scmp.ne.s32.totalorder %s286, %s300
      %p302 = scmp.eq.s32.totalorder %s26, 0
      %p303 = por %p301, %p302
      %s305 = sadd.s32 %s304, 1
      %p308 = scmp.eq.s32.totalorder %s20, 3
      %p309 = scmp.ne.s32.totalorder %s304, %s306
      %p310 = scmp.eq.s32.totalorder %s20, 0
      %p311 = por %p309, %p310
      %p312 = scmp.ne.s32.totalorder %s304, %s306
      %p313 = scmp.eq.s32.totalorder %s25, 3
      %p314 = por %p312, %p313
      %p315 = scmp.ne.s32.totalorder %s306, %s307
      %p316 = scmp.eq.s32.totalorder %s25, 0
      %p317 = por %p315, %p316
      %p318 = scmp.ne.s32.totalorder %s306, %s307
      %p319 = scmp.eq.s32.totalorder %s26, 3
      %p320 = por %p318, %p319
      %p322 = scmp.ne.s32.totalorder %s307, %s321
      %p323 = scmp.eq.s32.totalorder %s26, 0
      %p324 = por %p322, %p323
      %s325 = ssub.s32 %s27, %s46
      %s326 = ssub.s32 %s28, %s42
      %s327 = sor.u32 %s325, %s326
      %p328 = scmp.eq.s32.totalorder %s327, 0
      %s330 = sadd.s32 %s329, 1
      %s331 = scalar_select %p328, %s329, %s330
      %p334 = pneg %p328
      %p335 = scmp.eq.s32.totalorder %s20, 3
      %p336 = por %p334, %p335
      %p337 = scmp.ne.s32.totalorder %s329, %s332
      %p338 = scmp.eq.s32.totalorder %s20, 0
      %p339 = por %p337, %p338
      %p340 = scmp.ne.s32.totalorder %s329, %s332
      %p341 = scmp.eq.s32.totalorder %s25, 3
      %p342 = por %p340, %p341
      %p343 = scmp.ne.s32.totalorder %s332, %s333
      %p344 = scmp.eq.s32.totalorder %s25, 0
      %p345 = por %p343, %p344
      %p346 = scmp.ne.s32.totalorder %s332, %s333
      %p347 = scmp.eq.s32.totalorder %s26, 3
      %p348 = por %p346, %p347
      %p350 = scmp.ne.s32.totalorder %s333, %s349
      %p351 = scmp.eq.s32.totalorder %s26, 0
      %p352 = por %p350, %p351
      %p353 = scmp.le.s32.totalorder 1, %s20
      %p354 = scmp.lt.s32.totalorder %s20, 5
      %p355 = pnand %p353, %p354
      %p356 = pneg %p355
      // Predicated region
      $region9: #{tpu_custom_call.1} parent=5 // pred_check
        _
      $region10: #{tpu_custom_call.1} parent=5 // pred_check_branch
        %358 = sbr.rel (%p355) target = $region12
      $region11: #{tpu_custom_call.1} parent=5 // pred_region
        %s359 = ssub.s32 %s20, 1
        // Predicated region
        $region13: #{tpu_custom_call.1} parent=11 // pred_check
          %p360 = pneg %p296
        $region14: #{tpu_custom_call.1} parent=11 // pred_check_branch
          %362 = sbr.rel (%p360) target = $region16
        $region15: #{tpu_custom_call.1} parent=11 // pred_region
          _
        $region16: #{tpu_custom_call.1} parent=11 // pred_fallthru
          _
        // Predicated region
        $region17: #{tpu_custom_call.1} parent=11 // pred_check
          %p363 = pneg %p317
        $region18: #{tpu_custom_call.1} parent=11 // pred_check_branch
          %365 = sbr.rel (%p363) target = $region20
        $region19: #{tpu_custom_call.1} parent=11 // pred_region
          _
        $region20: #{tpu_custom_call.1} parent=11 // pred_fallthru
          _
      $region12: #{tpu_custom_call.1} parent=5 // pred_fallthru
        _
      %p366 = scmp.lt.s32.totalorder %s20, 4
      // Predicated region
      $region21: #{tpu_custom_call.1} parent=5 // pred_check
        %p367 = pneg %p366
      $region22: #{tpu_custom_call.1} parent=5 // pred_check_branch
        %369 = sbr.rel (%p367) target = $region24
      $region23: #{tpu_custom_call.1} parent=5 // pred_region
        // Predicated region
        $region25: #{tpu_custom_call.1} parent=23 // pred_check
          %p370 = pneg %p61
        $region26: #{tpu_custom_call.1} parent=23 // pred_check_branch
          %372 = sbr.rel (%p370) target = $region28
        $region27: #{tpu_custom_call.1} parent=23 // pred_region
          %p373 = scmp.lt.s32.totalorder %s27, 1
          %s374 = scalar_select %p373, %s27, 1
          %p375 = scmp.lt.s32.totalorder %s28, 0
          %s376 = scalar_select %p375, %s28, 0
          %s377 = sadd.s32 %s376, %s374
          %s378 = smul.addr %s377, 8
          %s379 = scalar_lea.vmem %s0, %s378
        $region28: #{tpu_custom_call.1} parent=23 // pred_fallthru
          _
        // Predicated region
        $region29: #{tpu_custom_call.1} parent=23 // pred_check
          %p380 = pneg %p87
        $region30: #{tpu_custom_call.1} parent=23 // pred_check_branch
          %382 = sbr.rel (%p380) target = $region32
        $region31: #{tpu_custom_call.1} parent=23 // pred_region
          %p383 = scmp.lt.s32.totalorder %s27, 1
          %s384 = scalar_select %p383, %s27, 1
          %s385 = smul.addr %s384, 8
          %s386 = scalar_lea.vmem %s1, %s385
        $region32: #{tpu_custom_call.1} parent=23 // pred_fallthru
          _
        // Predicated region
        $region33: #{tpu_custom_call.1} parent=23 // pred_check
          %p387 = pneg %p113
        $region34: #{tpu_custom_call.1} parent=23 // pred_check_branch
          %389 = sbr.rel (%p387) target = $region36
        $region35: #{tpu_custom_call.1} parent=23 // pred_region
          %p390 = scmp.lt.s32.totalorder %s29, 1
          %s391 = scalar_select %p390, %s29, 1
          %s392 = smul.addr %s391, 4
          %s393 = smul.addr %s392, 8
          %s394 = scalar_lea.vmem %s2, %s393
        $region36: #{tpu_custom_call.1} parent=23 // pred_fallthru
          _
        // Predicated region
        $region37: #{tpu_custom_call.1} parent=23 // pred_check
          %p395 = pneg %p139
        $region38: #{tpu_custom_call.1} parent=23 // pred_check_branch
          %397 = sbr.rel (%p395) target = $region40
        $region39: #{tpu_custom_call.1} parent=23 // pred_region
          %p398 = scmp.lt.s32.totalorder %s29, 1
          %s399 = scalar_select %p398, %s29, 1
          %s400 = scalar_lea.vmem %s3, %s399
        $region40: #{tpu_custom_call.1} parent=23 // pred_fallthru
          _
        // Predicated region
        $region41: #{tpu_custom_call.1} parent=23 // pred_check
          %p401 = pneg %p165
        $region42: #{tpu_custom_call.1} parent=23 // pred_check_branch
          %403 = sbr.rel (%p401) target = $region44
        $region43: #{tpu_custom_call.1} parent=23 // pred_region
          %p404 = scmp.lt.s32.totalorder %s29, 1
          %s405 = scalar_select %p404, %s29, 1
          %s406 = smul.addr %s405, 4
          %s407 = smul.addr %s406, 8
          %s408 = scalar_lea.vmem %s4, %s407
        $region44: #{tpu_custom_call.1} parent=23 // pred_fallthru
          _
        // Predicated region
        $region45: #{tpu_custom_call.1} parent=23 // pred_check
          %p409 = pneg %p191
        $region46: #{tpu_custom_call.1} parent=23 // pred_check_branch
          %411 = sbr.rel (%p409) target = $region48
        $region47: #{tpu_custom_call.1} parent=23 // pred_region
          %p412 = scmp.lt.s32.totalorder %s29, 1
          %s413 = scalar_select %p412, %s29, 1
          %s414 = scalar_lea.vmem %s5, %s413
        $region48: #{tpu_custom_call.1} parent=23 // pred_fallthru
          _
        // Predicated region
        $region49: #{tpu_custom_call.1} parent=23 // pred_check
          %p415 = pneg %p217
        $region50: #{tpu_custom_call.1} parent=23 // pred_check_branch
          %417 = sbr.rel (%p415) target = $region52
        $region51: #{tpu_custom_call.1} parent=23 // pred_region
          %p418 = scmp.lt.s32.totalorder %s29, 1
          %s419 = scalar_select %p418, %s29, 1
          %s420 = smul.addr %s419, 4
          %s421 = smul.addr %s420, 8
          %s422 = scalar_lea.vmem %s6, %s421
        $region52: #{tpu_custom_call.1} parent=23 // pred_fallthru
          _
        // Predicated region
        $region53: #{tpu_custom_call.1} parent=23 // pred_check
          %p423 = pneg %p243
        $region54: #{tpu_custom_call.1} parent=23 // pred_check_branch
          %425 = sbr.rel (%p423) target = $region56
        $region55: #{tpu_custom_call.1} parent=23 // pred_region
          %p426 = scmp.lt.s32.totalorder %s29, 1
          %s427 = scalar_select %p426, %s29, 1
          %s428 = scalar_lea.vmem %s7, %s427
        $region56: #{tpu_custom_call.1} parent=23 // pred_fallthru
          _
        // Predicated region
        $region57: #{tpu_custom_call.1} parent=23 // pred_check
          %p429 = pneg %p269
        $region58: #{tpu_custom_call.1} parent=23 // pred_check_branch
          %431 = sbr.rel (%p429) target = $region60
        $region59: #{tpu_custom_call.1} parent=23 // pred_region
          %p432 = scmp.lt.s32.totalorder %s29, 1
          %s433 = scalar_select %p432, %s29, 1
          %s434 = smul.addr %s433, 2
          %s435 = smul.addr %s434, 8
          %s436 = scalar_lea.vmem %s8, %s435
        $region60: #{tpu_custom_call.1} parent=23 // pred_fallthru
          _
      $region24: #{tpu_custom_call.1} parent=5 // pred_fallthru
        _
      %p437 = scmp.le.s32.totalorder 1, %s20
      %p438 = scmp.lt.s32.totalorder %s20, 5
      %p439 = pnand %p437, %p438
      %p440 = pneg %p439
      // Predicated region
      $region61: #{tpu_custom_call.1} parent=5 // pred_check
        _
      $region62: #{tpu_custom_call.1} parent=5 // pred_check_branch
        %442 = sbr.rel (%p439) target = $region64
      $region63: #{tpu_custom_call.1} parent=5 // pred_region
        %s443 = ssub.s32 %s20, 1
        %p444 = scmp.lt.s32.totalorder %s30, 1
        %s445 = scalar_select %p444, %s30, 1
        %p446 = scmp.lt.s32.totalorder %s31, 0
        %s447 = scalar_select %p446, %s31, 0
        %s448 = sadd.s32 %s447, %s445
        %s449 = smul.addr %s448, 8
        %s450 = scalar_lea.vmem %s0, %s449
        %p451 = pneg %p67
        %p452 = pneg %p64
        %p453 = scmp.lt.s32.totalorder %s30, 1
        %s454 = scalar_select %p453, %s30, 1
        %s455 = smul.addr %s454, 8
        %s456 = scalar_lea.vmem %s1, %s455
        %p457 = pneg %p93
        %p458 = pneg %p90
        %p459 = scmp.lt.s32.totalorder %s32, 1
        %s460 = scalar_select %p459, %s32, 1
        %s461 = smul.addr %s460, 4
        %s462 = smul.addr %s461, 8
        %s463 = scalar_lea.vmem %s2, %s462
        %p464 = pneg %p119
        %p465 = pneg %p116
        %p466 = scmp.lt.s32.totalorder %s32, 1
        %s467 = scalar_select %p466, %s32, 1
        %s468 = scalar_lea.vmem %s3, %s467
        %p469 = pneg %p145
        %p470 = pneg %p142
        %p471 = scmp.lt.s32.totalorder %s32, 1
        %s472 = scalar_select %p471, %s32, 1
        %s473 = smul.addr %s472, 4
        %s474 = smul.addr %s473, 8
        %s475 = scalar_lea.vmem %s4, %s474
        %p476 = pneg %p171
        %p477 = pneg %p168
        %p478 = scmp.lt.s32.totalorder %s32, 1
        %s479 = scalar_select %p478, %s32, 1
        %s480 = scalar_lea.vmem %s5, %s479
        %p481 = pneg %p197
        %p482 = pneg %p194
        %p483 = scmp.lt.s32.totalorder %s32, 1
        %s484 = scalar_select %p483, %s32, 1
        %s485 = smul.addr %s484, 4
        %s486 = smul.addr %s485, 8
        %s487 = scalar_lea.vmem %s6, %s486
        %p488 = pneg %p223
        %p489 = pneg %p220
        %p490 = scmp.lt.s32.totalorder %s32, 1
        %s491 = scalar_select %p490, %s32, 1
        %s492 = scalar_lea.vmem %s7, %s491
        %p493 = pneg %p249
        %p494 = pneg %p246
        %p495 = scmp.lt.s32.totalorder %s32, 1
        %s496 = scalar_select %p495, %s32, 1
        %s497 = smul.addr %s496, 2
        %s498 = smul.addr %s497, 8
        %s499 = scalar_lea.vmem %s8, %s498
        %p500 = pneg %p275
        %p501 = pneg %p272
        %p502 = pneg %p296
        %p503 = pneg %p293
        %p504 = pneg %p317
        %p505 = pneg %p314
        %p506 = pneg %p345
        %p507 = pneg %p342
        %s508 = sand.u32 %s332, 1
        %s509 = scalar_lea.sflag [#allocation6], %s508
        %s510 = sand.u32 %s332, 1
        %s511 = smul.addr %s510, 8
        %s512 = scalar_lea.vmem [#allocation5], %s511
        %p513 = scmp.lt.s32.totalorder %s30, 1
        %s514 = scalar_select %p513, %s30, 1
        %p515 = scmp.lt.s32.totalorder %s31, 0
        %s516 = scalar_select %p515, %s31, 0
        %s517 = sadd.s32 %s516, %s514
        %s518 = smul.addr %s517, 8
        %s519 = scalar_lea.vmem %s0, %s518
        %p520 = scmp.lt.s32.totalorder %s30, 1
        %s521 = scalar_select %p520, %s30, 1
        %s522 = smul.addr %s521, 8
        %s523 = scalar_lea.vmem %s1, %s522
        %p524 = scmp.lt.s32.totalorder %s32, 1
        %s525 = scalar_select %p524, %s32, 1
        %s526 = smul.addr %s525, 4
        %s527 = smul.addr %s526, 8
        %s528 = scalar_lea.vmem %s2, %s527
        %p529 = scmp.lt.s32.totalorder %s32, 1
        %s530 = scalar_select %p529, %s32, 1
        %s531 = scalar_lea.vmem %s3, %s530
        %p532 = scmp.lt.s32.totalorder %s32, 1
        %s533 = scalar_select %p532, %s32, 1
        %s534 = smul.addr %s533, 4
        %s535 = smul.addr %s534, 8
        %s536 = scalar_lea.vmem %s4, %s535
        %p537 = scmp.lt.s32.totalorder %s32, 1
        %s538 = scalar_select %p537, %s32, 1
        %s539 = scalar_lea.vmem %s5, %s538
        %p540 = scmp.lt.s32.totalorder %s32, 1
        %s541 = scalar_select %p540, %s32, 1
        %s542 = smul.addr %s541, 4
        %s543 = smul.addr %s542, 8
        %s544 = scalar_lea.vmem %s6, %s543
        %p545 = scmp.lt.s32.totalorder %s32, 1
        %s546 = scalar_select %p545, %s32, 1
        %s547 = scalar_lea.vmem %s7, %s546
        %p548 = scmp.lt.s32.totalorder %s32, 1
        %s549 = scalar_select %p548, %s32, 1
        %s550 = smul.addr %s549, 2
        %s551 = smul.addr %s550, 8
        %s552 = scalar_lea.vmem %s8, %s551
        %v553 = vld [vmem:[%s519] sm:$0xff]
        %p554 = scmp.eq.s32.totalorder %s32, 0
        // Predicated region
        $region65: #{tpu_custom_call.1} parent=63 // pred_check
          %p555 = pneg %p554
        $region66: #{tpu_custom_call.1} parent=63 // pred_check_branch
          %557 = sbr.rel (%p555) target = $region68
        $region67: #{tpu_custom_call.1} parent=63 // pred_region
          %vm558 = vcmask 261120
          %559 = vst.msk [vmem:[#allocation2] sm:$0xff] %vm558, %v553
        $region68: #{tpu_custom_call.1} parent=63 // pred_fallthru
          _
        %p560 = scmp.eq.s32.totalorder %s31, 0
        // Predicated region
        $region69: #{tpu_custom_call.1} parent=63 // pred_check
          %p561 = pneg %p560
        $region70: #{tpu_custom_call.1} parent=63 // pred_check_branch
          %563 = sbr.rel (%p561) target = $region72
        $region71: #{tpu_custom_call.1} parent=63 // pred_region
          %v564 = vld [vmem:[%s523] sm:$0xff]
          %v565 = vld [vmem:[%s536] sm:$0xff]
          %v566 = vld [vmem:[%s536 + $0x8] sm:$0xff]
          %v567 = vld [vmem:[%s536 + $0x10] sm:$0xff]
          %v568 = vld [vmem:[%s536 + $0x18] sm:$0xff]
          %v569 = vld [vmem:[%s539] sm:$0x1]
          %v571 = vlaneseq
          %v572 = vshrl.u32 %v571, 7
          %v573 = vsub.s32 0, %v572
          %v574 = vrot.slane %v569, %v573
          %vm576 = vcmask 261120
          %v578 = vsel %vm576, %v564, 0
          %580 = vmatprep.subr.mxu0 0.0
          %581 = vmatpush1.msra.mxu0 0.0
          %582 = vmatprep.subr.mxu0 0.0
          %583 = vmatpush1.msra.mxu0 0.0
          %584 = vmatprep.subr.mxu0 0.0
          %585 = vmatpush1.msra.mxu0 0.0
          %586 = vmatprep.subr.mxu0 0.0
          %587 = vmatpush1.msra.mxu0 0.0
          %588 = vmatprep.subr.mxu0 0.0
          %589 = vmatpush1.msra.mxu0 0.0
          %590 = vmatprep.subr.mxu0 0.0
          %591 = vmatpush1.msra.mxu0 0.0
          %592 = vmatprep.subr.mxu0 0.0
          %593 = vmatpush1.msra.mxu0 0.0
          %594 = vmatprep.subr.mxu0 0.0
          %595 = vmatpush1.msra.mxu0 0.0
          %596 = vmatprep.subr.mxu0 0.0
          %597 = vmatpush1.msra.mxu0 0.0
          %598 = vmatprep.subr.mxu0 0.0
          %599 = vmatpush1.msra.mxu0 0.0
          %600 = vmatprep.subr.mxu0 0.0
          %601 = vmatpush1.msra.mxu0 0.0
          %602 = vmatprep.subr.mxu0 0.0
          %603 = vmatpush1.msra.mxu0 0.0
          %604 = vmatprep.subr.mxu0 0.0
          %605 = vmatpush1.msra.mxu0 %v568
          %606 = vmatprep.subr.mxu0 0.0
          %607 = vmatpush1.msra.mxu0 %v567
          %608 = vmatprep.subr.mxu0 0.0
          %609 = vmatpush1.msra.mxu0 %v566
          %610 = vmatprep.subr.mxu0 0.0
          %611 = vmatpush1.msra.mxu0 %v565
          %612 = vmatprep.subr.mxu0 0.0
          %613 = vmatpush2.msra.mxu0 0.0
          %614 = vmatprep.subr.mxu0 0.0
          %615 = vmatpush2.msra.mxu0 0.0
          %616 = vmatprep.subr.mxu0 0.0
          %617 = vmatpush2.msra.mxu0 0.0
          %618 = vmatprep.subr.mxu0 0.0
          %619 = vmatpush2.msra.mxu0 0.0
          %620 = vmatprep.subr.mxu0 0.0
          %621 = vmatpush2.msra.mxu0 0.0
          %622 = vmatprep.subr.mxu0 0.0
          %623 = vmatpush2.msra.mxu0 0.0
          %624 = vmatprep.subr.mxu0 0.0
          %625 = vmatpush2.msra.mxu0 0.0
          %626 = vmatprep.subr.mxu0 0.0
          %627 = vmatpush2.msra.mxu0 0.0
          %628 = vmatprep.subr.mxu0 0.0
          %629 = vmatpush2.msra.mxu0 0.0
          %630 = vmatprep.subr.mxu0 0.0
          %631 = vmatpush2.msra.mxu0 0.0
          %632 = vmatprep.subr.mxu0 0.0
          %633 = vmatpush2.msra.mxu0 0.0
          %634 = vmatprep.subr.mxu0 0.0
          %635 = vmatpush2.msra.mxu0 0.0
          %636 = vmatprep.subr.mxu0 0.0
          %637 = vmatpush2.msra.mxu0 0.0
          %638 = vmatprep.subr.mxu0 0.0
          %639 = vmatpush2.msra.mxu0 0.0
          %640 = vmatprep.subr.mxu0 0.0
          %641 = vmatpush2.msra.mxu0 0.0
          %642 = vmatprep.subr.mxu0 0.0
          %643 = vmatpush2.msra.mxu0 0.0
          %644 = vmatprep.mubr.f32.mxu0 0.0
          %645 = vmatmul.mubr.f32.gmra.mxu0 %v578
          %v646 = vpop.f32.mrf.mxu0
          %v647 = vadd.f32 %v574, %v646
          %v648 = vpop.f32.mrf.mxu0
          %649 = vdwg.mxu0
          %v650 = vld [vmem:[%s544] sm:$0xff]
          %v651 = vld [vmem:[%s544 + $0x8] sm:$0xff]
          %v652 = vld [vmem:[%s544 + $0x10] sm:$0xff]
          %v653 = vld [vmem:[%s544 + $0x18] sm:$0xff]
          %v654 = vld [vmem:[%s547] sm:$0x1]
          %v656 = vlaneseq
          %v657 = vshrl.u32 %v656, 7
          %v658 = vsub.s32 0, %v657
          %v659 = vrot.slane %v654, %v658
          %661 = vmatprep.subr.mxu0 0.0
          %662 = vmatpush1.msra.mxu0 0.0
          %663 = vmatprep.subr.mxu0 0.0
          %664 = vmatpush1.msra.mxu0 0.0
          %665 = vmatprep.subr.mxu0 0.0
          %666 = vmatpush1.msra.mxu0 0.0
          %667 = vmatprep.subr.mxu0 0.0
          %668 = vmatpush1.msra.mxu0 0.0
          %669 = vmatprep.subr.mxu0 0.0
          %670 = vmatpush1.msra.mxu0 0.0
          %671 = vmatprep.subr.mxu0 0.0
          %672 = vmatpush1.msra.mxu0 0.0
          %673 = vmatprep.subr.mxu0 0.0
          %674 = vmatpush1.msra.mxu0 0.0
          %675 = vmatprep.subr.mxu0 0.0
          %676 = vmatpush1.msra.mxu0 0.0
          %677 = vmatprep.subr.mxu0 0.0
          %678 = vmatpush1.msra.mxu0 0.0
          %679 = vmatprep.subr.mxu0 0.0
          %680 = vmatpush1.msra.mxu0 0.0
          %681 = vmatprep.subr.mxu0 0.0
          %682 = vmatpush1.msra.mxu0 0.0
          %683 = vmatprep.subr.mxu0 0.0
          %684 = vmatpush1.msra.mxu0 0.0
          %685 = vmatprep.subr.mxu0 0.0
          %686 = vmatpush1.msra.mxu0 %v653
          %687 = vmatprep.subr.mxu0 0.0
          %688 = vmatpush1.msra.mxu0 %v652
          %689 = vmatprep.subr.mxu0 0.0
          %690 = vmatpush1.msra.mxu0 %v651
          %691 = vmatprep.subr.mxu0 0.0
          %692 = vmatpush1.msra.mxu0 %v650
          %693 = vmatprep.subr.mxu0 0.0
          %694 = vmatpush2.msra.mxu0 0.0
          %695 = vmatprep.subr.mxu0 0.0
          %696 = vmatpush2.msra.mxu0 0.0
          %697 = vmatprep.subr.mxu0 0.0
          %698 = vmatpush2.msra.mxu0 0.0
          %699 = vmatprep.subr.mxu0 0.0
          %700 = vmatpush2.msra.mxu0 0.0
          %701 = vmatprep.subr.mxu0 0.0
          %702 = vmatpush2.msra.mxu0 0.0
          %703 = vmatprep.subr.mxu0 0.0
          %704 = vmatpush2.msra.mxu0 0.0
          %705 = vmatprep.subr.mxu0 0.0
          %706 = vmatpush2.msra.mxu0 0.0
          %707 = vmatprep.subr.mxu0 0.0
          %708 = vmatpush2.msra.mxu0 0.0
          %709 = vmatprep.subr.mxu0 0.0
          %710 = vmatpush2.msra.mxu0 0.0
          %711 = vmatprep.subr.mxu0 0.0
          %712 = vmatpush2.msra.mxu0 0.0
          %713 = vmatprep.subr.mxu0 0.0
          %714 = vmatpush2.msra.mxu0 0.0
          %715 = vmatprep.subr.mxu0 0.0
          %716 = vmatpush2.msra.mxu0 0.0
          %717 = vmatprep.subr.mxu0 0.0
          %718 = vmatpush2.msra.mxu0 0.0
          %719 = vmatprep.subr.mxu0 0.0
          %720 = vmatpush2.msra.mxu0 0.0
          %721 = vmatprep.subr.mxu0 0.0
          %722 = vmatpush2.msra.mxu0 0.0
          %723 = vmatprep.subr.mxu0 0.0
          %724 = vmatpush2.msra.mxu0 0.0
          %725 = vmatprep.mubr.f32.mxu0 0.0
          %726 = vmatmul.mubr.f32.gmra.mxu0 %v578
          %v727 = vpop.f32.mrf.mxu0
          %v728 = vadd.f32 %v659, %v727
          %v729 = vpop.f32.mrf.mxu0
          %730 = vdwg.mxu0
          %s731 = smul.u32 %s32, 8
          %s732 = scalar_lea.vmem [#allocation3], %s731
          %vm733 = vcmask 130048
          %734 = vst.msk [vmem:[%s732] sm:$0xff] %vm733, %v647
          %s735 = scalar_lea.vmem [#allocation4], %s731
          %736 = vst.msk [vmem:[%s735] sm:$0xff] %vm733, %v728
        $region72: #{tpu_custom_call.1} parent=63 // pred_fallthru
          _
        %s737 = smul.u32 %s32, 8
        %s738 = scalar_lea.vmem [#allocation3], %s737
        %v739 = vld [vmem:[%s738] sm:$0xff]
        %s740 = scalar_lea.vmem [#allocation4], %s737
        %v741 = vld [vmem:[%s740] sm:$0xff]
        %v742 = vld [vmem:[%s528] sm:$0xff]
        %v743 = vld [vmem:[%s528 + $0x8] sm:$0xff]
        %v744 = vld [vmem:[%s528 + $0x10] sm:$0xff]
        %v745 = vld [vmem:[%s528 + $0x18] sm:$0xff]
        %v746 = vld [vmem:[%s531] sm:$0x1]
        %v748 = vlaneseq
        %v749 = vshrl.u32 %v748, 7
        %v750 = vsub.s32 0, %v749
        %v751 = vrot.slane %v746, %v750
        %vm753 = vcmask 261120
        %v755 = vsel %vm753, %v553, 0
        %757 = vmatprep.subr.mxu0 0.0
        %758 = vmatpush1.msra.mxu0 0.0
        %759 = vmatprep.subr.mxu0 0.0
        %760 = vmatpush1.msra.mxu0 0.0
        %761 = vmatprep.subr.mxu0 0.0
        %762 = vmatpush1.msra.mxu0 0.0
        %763 = vmatprep.subr.mxu0 0.0
        %764 = vmatpush1.msra.mxu0 0.0
        %765 = vmatprep.subr.mxu0 0.0
        %766 = vmatpush1.msra.mxu0 0.0
        %767 = vmatprep.subr.mxu0 0.0
        %768 = vmatpush1.msra.mxu0 0.0
        %769 = vmatprep.subr.mxu0 0.0
        %770 = vmatpush1.msra.mxu0 0.0
        %771 = vmatprep.subr.mxu0 0.0
        %772 = vmatpush1.msra.mxu0 0.0
        %773 = vmatprep.subr.mxu0 0.0
        %774 = vmatpush1.msra.mxu0 0.0
        %775 = vmatprep.subr.mxu0 0.0
        %776 = vmatpush1.msra.mxu0 0.0
        %777 = vmatprep.subr.mxu0 0.0
        %778 = vmatpush1.msra.mxu0 0.0
        %779 = vmatprep.subr.mxu0 0.0
        %780 = vmatpush1.msra.mxu0 0.0
        %781 = vmatprep.subr.mxu0 0.0
        %782 = vmatpush1.msra.mxu0 %v745
        %783 = vmatprep.subr.mxu0 0.0
        %784 = vmatpush1.msra.mxu0 %v744
        %785 = vmatprep.subr.mxu0 0.0
        %786 = vmatpush1.msra.mxu0 %v743
        %787 = vmatprep.subr.mxu0 0.0
        %788 = vmatpush1.msra.mxu0 %v742
        %789 = vmatprep.subr.mxu0 0.0
        %790 = vmatpush2.msra.mxu0 0.0
        %791 = vmatprep.subr.mxu0 0.0
        %792 = vmatpush2.msra.mxu0 0.0
        %793 = vmatprep.subr.mxu0 0.0
        %794 = vmatpush2.msra.mxu0 0.0
        %795 = vmatprep.subr.mxu0 0.0
        %796 = vmatpush2.msra.mxu0 0.0
        %797 = vmatprep.subr.mxu0 0.0
        %798 = vmatpush2.msra.mxu0 0.0
        %799 = vmatprep.subr.mxu0 0.0
        %800 = vmatpush2.msra.mxu0 0.0
        %801 = vmatprep.subr.mxu0 0.0
        %802 = vmatpush2.msra.mxu0 0.0
        %803 = vmatprep.subr.mxu0 0.0
        %804 = vmatpush2.msra.mxu0 0.0
        %805 = vmatprep.subr.mxu0 0.0
        %806 = vmatpush2.msra.mxu0 0.0
        %807 = vmatprep.subr.mxu0 0.0
        %808 = vmatpush2.msra.mxu0 0.0
        %809 = vmatprep.subr.mxu0 0.0
        %810 = vmatpush2.msra.mxu0 0.0
        %811 = vmatprep.subr.mxu0 0.0
        %812 = vmatpush2.msra.mxu0 0.0
        %813 = vmatprep.subr.mxu0 0.0
        %814 = vmatpush2.msra.mxu0 0.0
        %815 = vmatprep.subr.mxu0 0.0
        %816 = vmatpush2.msra.mxu0 0.0
        %817 = vmatprep.subr.mxu0 0.0
        %818 = vmatpush2.msra.mxu0 0.0
        %819 = vmatprep.subr.mxu0 0.0
        %820 = vmatpush2.msra.mxu0 0.0
        %821 = vmatprep.mubr.f32.mxu0 0.0
        %822 = vmatmul.mubr.f32.gmra.mxu0 %v755
        %v823 = vpop.f32.mrf.mxu0
        %v824 = vadd.f32 %v751, %v823
        %v825 = vpop.f32.mrf.mxu0
        %826 = vdwg.mxu0
        %v827 = vmul.f32 %v824, 0.25
        %vm828 = vcmask 130048
        %v830 = vsel %vm828, %v827, 0
        %v833 = vsel %vm828, %v739, 0
        %835 = vmatprep.subr.mxu0 0.0
        %836 = vmatpush1.xpose.msra.mxu0 0.0
        %837 = vmatprep.subr.mxu0 0.0
        %838 = vmatpush1.xpose.msra.mxu0 0.0
        %839 = vmatprep.subr.mxu0 0.0
        %840 = vmatpush1.xpose.msra.mxu0 0.0
        %841 = vmatprep.subr.mxu0 0.0
        %842 = vmatpush1.xpose.msra.mxu0 0.0
        %843 = vmatprep.subr.mxu0 0.0
        %844 = vmatpush1.xpose.msra.mxu0 0.0
        %845 = vmatprep.subr.mxu0 0.0
        %846 = vmatpush1.xpose.msra.mxu0 0.0
        %847 = vmatprep.subr.mxu0 0.0
        %848 = vmatpush1.xpose.msra.mxu0 0.0
        %849 = vmatprep.subr.mxu0 0.0
        %850 = vmatpush1.xpose.msra.mxu0 0.0
        %851 = vmatprep.subr.mxu0 0.0
        %852 = vmatpush1.xpose.msra.mxu0 0.0
        %853 = vmatprep.subr.mxu0 0.0
        %854 = vmatpush1.xpose.msra.mxu0 0.0
        %855 = vmatprep.subr.mxu0 0.0
        %856 = vmatpush1.xpose.msra.mxu0 0.0
        %857 = vmatprep.subr.mxu0 0.0
        %858 = vmatpush1.xpose.msra.mxu0 0.0
        %859 = vmatprep.subr.mxu0 0.0
        %860 = vmatpush1.xpose.msra.mxu0 0.0
        %861 = vmatprep.subr.mxu0 0.0
        %862 = vmatpush1.xpose.msra.mxu0 0.0
        %863 = vmatprep.subr.mxu0 0.0
        %864 = vmatpush1.xpose.msra.mxu0 0.0
        %865 = vmatprep.subr.mxu0 0.0
        %866 = vmatpush1.xpose.msra.mxu0 %v833
        %867 = vmatprep.subr.mxu0 0.0
        %868 = vmatpush2.xpose.msra.mxu0 0.0
        %869 = vmatprep.subr.mxu0 0.0
        %870 = vmatpush2.xpose.msra.mxu0 0.0
        %871 = vmatprep.subr.mxu0 0.0
        %872 = vmatpush2.xpose.msra.mxu0 0.0
        %873 = vmatprep.subr.mxu0 0.0
        %874 = vmatpush2.xpose.msra.mxu0 0.0
        %875 = vmatprep.subr.mxu0 0.0
        %876 = vmatpush2.xpose.msra.mxu0 0.0
        %877 = vmatprep.subr.mxu0 0.0
        %878 = vmatpush2.xpose.msra.mxu0 0.0
        %879 = vmatprep.subr.mxu0 0.0
        %880 = vmatpush2.xpose.msra.mxu0 0.0
        %881 = vmatprep.subr.mxu0 0.0
        %882 = vmatpush2.xpose.msra.mxu0 0.0
        %883 = vmatprep.subr.mxu0 0.0
        %884 = vmatpush2.xpose.msra.mxu0 0.0
        %885 = vmatprep.subr.mxu0 0.0
        %886 = vmatpush2.xpose.msra.mxu0 0.0
        %887 = vmatprep.subr.mxu0 0.0
        %888 = vmatpush2.xpose.msra.mxu0 0.0
        %889 = vmatprep.subr.mxu0 0.0
        %890 = vmatpush2.xpose.msra.mxu0 0.0
        %891 = vmatprep.subr.mxu0 0.0
        %892 = vmatpush2.xpose.msra.mxu0 0.0
        %893 = vmatprep.subr.mxu0 0.0
        %894 = vmatpush2.xpose.msra.mxu0 0.0
        %895 = vmatprep.subr.mxu0 0.0
        %896 = vmatpush2.xpose.msra.mxu0 0.0
        %897 = vmatprep.subr.mxu0 0.0
        %898 = vmatpush2.xpose.msra.mxu0 0.0
        %899 = vmatprep.mubr.f32.mxu0 0.0
        %900 = vmatmul.mubr.f32.gmra.mxu0 %v830
        %v901 = vpop.f32.mrf.mxu0
        %v902 = vadd.f32 0.0, %v901
        %v903 = vpop.f32.mrf.mxu0
        %904 = vdwg.mxu0
        %vm905 = vcmask 64512
        %v906 = vsel %vm905, %v902, -inf
        %907 = vmax.xlane.f32.xlu0 %v906
        %v908 = vpop.xlane.xlu0 %907
        %v909 = vsub.f32 %v902, %v908
        %v910 = vmul.f32 %v909, 1.442695
        %v911 = vpow.pop %v910
        %v912 = vsel %vm905, %v911, 0.0
        %913 = vadd.xlane.f32.xlu0 %v912
        %v914 = vpop.xlane.xlu0 %913
        %v915 = vrcp.pop %v914
        %v916 = vmul.f32 %v911, %v915
        %v918 = vsel %vm905, %v916, 0
        %920 = vmatprep.subr.mxu0 0.0
        %921 = vmatpush1.msra.mxu0 0.0
        %922 = vmatprep.subr.mxu0 0.0
        %923 = vmatpush1.msra.mxu0 0.0
        %924 = vmatprep.subr.mxu0 0.0
        %925 = vmatpush1.msra.mxu0 0.0
        %926 = vmatprep.subr.mxu0 0.0
        %927 = vmatpush1.msra.mxu0 0.0
        %928 = vmatprep.subr.mxu0 0.0
        %929 = vmatpush1.msra.mxu0 0.0
        %930 = vmatprep.subr.mxu0 0.0
        %931 = vmatpush1.msra.mxu0 0.0
        %932 = vmatprep.subr.mxu0 0.0
        %933 = vmatpush1.msra.mxu0 0.0
        %934 = vmatprep.subr.mxu0 0.0
        %935 = vmatpush1.msra.mxu0 0.0
        %936 = vmatprep.subr.mxu0 0.0
        %937 = vmatpush1.msra.mxu0 0.0
        %938 = vmatprep.subr.mxu0 0.0
        %939 = vmatpush1.msra.mxu0 0.0
        %940 = vmatprep.subr.mxu0 0.0
        %941 = vmatpush1.msra.mxu0 0.0
        %942 = vmatprep.subr.mxu0 0.0
        %943 = vmatpush1.msra.mxu0 0.0
        %944 = vmatprep.subr.mxu0 0.0
        %945 = vmatpush1.msra.mxu0 0.0
        %946 = vmatprep.subr.mxu0 0.0
        %947 = vmatpush1.msra.mxu0 0.0
        %948 = vmatprep.subr.mxu0 0.0
        %949 = vmatpush1.msra.mxu0 0.0
        %950 = vmatprep.subr.mxu0 0.0
        %951 = vmatpush1.msra.mxu0 %v741
        %952 = vmatprep.subr.mxu0 0.0
        %953 = vmatpush2.msra.mxu0 0.0
        %954 = vmatprep.subr.mxu0 0.0
        %955 = vmatpush2.msra.mxu0 0.0
        %956 = vmatprep.subr.mxu0 0.0
        %957 = vmatpush2.msra.mxu0 0.0
        %958 = vmatprep.subr.mxu0 0.0
        %959 = vmatpush2.msra.mxu0 0.0
        %960 = vmatprep.subr.mxu0 0.0
        %961 = vmatpush2.msra.mxu0 0.0
        %962 = vmatprep.subr.mxu0 0.0
        %963 = vmatpush2.msra.mxu0 0.0
        %964 = vmatprep.subr.mxu0 0.0
        %965 = vmatpush2.msra.mxu0 0.0
        %966 = vmatprep.subr.mxu0 0.0
        %967 = vmatpush2.msra.mxu0 0.0
        %968 = vmatprep.subr.mxu0 0.0
        %969 = vmatpush2.msra.mxu0 0.0
        %970 = vmatprep.subr.mxu0 0.0
        %971 = vmatpush2.msra.mxu0 0.0
        %972 = vmatprep.subr.mxu0 0.0
        %973 = vmatpush2.msra.mxu0 0.0
        %974 = vmatprep.subr.mxu0 0.0
        %975 = vmatpush2.msra.mxu0 0.0
        %976 = vmatprep.subr.mxu0 0.0
        %977 = vmatpush2.msra.mxu0 0.0
        %978 = vmatprep.subr.mxu0 0.0
        %979 = vmatpush2.msra.mxu0 0.0
        %980 = vmatprep.subr.mxu0 0.0
        %981 = vmatpush2.msra.mxu0 0.0
        %982 = vmatprep.subr.mxu0 0.0
        %983 = vmatpush2.msra.mxu0 0.0
        %984 = vmatprep.mubr.f32.mxu0 0.0
        %985 = vmatmul.mubr.f32.gmra.mxu0 %v918
        %v986 = vpop.f32.mrf.mxu0
        %v987 = vadd.f32 0.0, %v986
        %v988 = vpop.f32.mrf.mxu0
        %989 = vdwg.mxu0
        %v990 = vld [vmem:[#allocation2] sm:$0xff]
        %v991 = vld [vmem:[%s552] sm:$0xff]
        %v992 = vld [vmem:[%s552 + $0x8] sm:$0xff]
        %v994 = vsel %vm828, %v987, 0
        %996 = vmatprep.subr.mxu0 0.0
        %997 = vmatpush1.msra.mxu0 0.0
        %998 = vmatprep.subr.mxu0 0.0
        %999 = vmatpush1.msra.mxu0 0.0
        %1000 = vmatprep.subr.mxu0 0.0
        %1001 = vmatpush1.msra.mxu0 0.0
        %1002 = vmatprep.subr.mxu0 0.0
        %1003 = vmatpush1.msra.mxu0 0.0
        %1004 = vmatprep.subr.mxu0 0.0
        %1005 = vmatpush1.msra.mxu0 0.0
        %1006 = vmatprep.subr.mxu0 0.0
        %1007 = vmatpush1.msra.mxu0 0.0
        %1008 = vmatprep.subr.mxu0 0.0
        %1009 = vmatpush1.msra.mxu0 0.0
        %1010 = vmatprep.subr.mxu0 0.0
        %1011 = vmatpush1.msra.mxu0 0.0
        %1012 = vmatprep.subr.mxu0 0.0
        %1013 = vmatpush1.msra.mxu0 0.0
        %1014 = vmatprep.subr.mxu0 0.0
        %1015 = vmatpush1.msra.mxu0 0.0
        %1016 = vmatprep.subr.mxu0 0.0
        %1017 = vmatpush1.msra.mxu0 0.0
        %1018 = vmatprep.subr.mxu0 0.0
        %1019 = vmatpush1.msra.mxu0 0.0
        %1020 = vmatprep.subr.mxu0 0.0
        %1021 = vmatpush1.msra.mxu0 0.0
        %1022 = vmatprep.subr.mxu0 0.0
        %1023 = vmatpush1.msra.mxu0 0.0
        %1024 = vmatprep.subr.mxu0 0.0
        %1025 = vmatpush1.msra.mxu0 %v992
        %1026 = vmatprep.subr.mxu0 0.0
        %1027 = vmatpush1.msra.mxu0 %v991
        %1028 = vmatprep.subr.mxu0 0.0
        %1029 = vmatpush2.msra.mxu0 0.0
        %1030 = vmatprep.subr.mxu0 0.0
        %1031 = vmatpush2.msra.mxu0 0.0
        %1032 = vmatprep.subr.mxu0 0.0
        %1033 = vmatpush2.msra.mxu0 0.0
        %1034 = vmatprep.subr.mxu0 0.0
        %1035 = vmatpush2.msra.mxu0 0.0
        %1036 = vmatprep.subr.mxu0 0.0
        %1037 = vmatpush2.msra.mxu0 0.0
        %1038 = vmatprep.subr.mxu0 0.0
        %1039 = vmatpush2.msra.mxu0 0.0
        %1040 = vmatprep.subr.mxu0 0.0
        %1041 = vmatpush2.msra.mxu0 0.0
        %1042 = vmatprep.subr.mxu0 0.0
        %1043 = vmatpush2.msra.mxu0 0.0
        %1044 = vmatprep.subr.mxu0 0.0
        %1045 = vmatpush2.msra.mxu0 0.0
        %1046 = vmatprep.subr.mxu0 0.0
        %1047 = vmatpush2.msra.mxu0 0.0
        %1048 = vmatprep.subr.mxu0 0.0
        %1049 = vmatpush2.msra.mxu0 0.0
        %1050 = vmatprep.subr.mxu0 0.0
        %1051 = vmatpush2.msra.mxu0 0.0
        %1052 = vmatprep.subr.mxu0 0.0
        %1053 = vmatpush2.msra.mxu0 0.0
        %1054 = vmatprep.subr.mxu0 0.0
        %1055 = vmatpush2.msra.mxu0 0.0
        %1056 = vmatprep.subr.mxu0 0.0
        %1057 = vmatpush2.msra.mxu0 0.0
        %1058 = vmatprep.subr.mxu0 0.0
        %1059 = vmatpush2.msra.mxu0 0.0
        %1060 = vmatprep.mubr.f32.mxu0 0.0
        %1061 = vmatmul.mubr.f32.gmra.mxu0 %v994
        %v1062 = vpop.f32.mrf.mxu0
        %v1063 = vadd.f32 0.0, %v1062
        %v1064 = vpop.f32.mrf.mxu0
        %1065 = vdwg.mxu0
        %v1066 = vadd.f32 %v990, %v1063
        %1067 = vst.msk [vmem:[#allocation2] sm:$0xff] %vm753, %v1066
        %p1068 = scmp.eq.s32.totalorder %s32, 1
        // Predicated region
        $region73: #{tpu_custom_call.1} parent=63 // pred_check
          %p1069 = pneg %p1068
        $region74: #{tpu_custom_call.1} parent=63 // pred_check_branch
          %1071 = sbr.rel (%p1069) target = $region76
        $region75: #{tpu_custom_call.1} parent=63 // pred_region
          %v1072 = vld [vmem:[#allocation2] sm:$0xff]
          %v1073 = vsel %vm753, %v1072, 0.0
          %1074 = vadd.xlane.f32.xlu0 %v1073
          %v1075 = vpop.xlane.xlu0 %1074
          %v1076 = vrcp.pop 32.0
          %v1077 = vmul.f32 %v1075, %v1076
          %v1078 = vsub.f32 %v1072, %v1077
          %v1079 = vmul.f32 %v1078, %v1078
          %v1080 = vsel %vm753, %v1079, 0.0
          %1081 = vadd.xlane.f32.xlu0 %v1080
          %v1082 = vpop.xlane.xlu0 %1081
          %v1083 = vmul.f32 %v1082, %v1076
          %v1084 = vadd.f32 %v1083, 1e-05
          %v1085 = vrsqrt.pop %v1084
          %v1086 = vmul.f32 %v1078, %v1085
          %v1087 = vld [vmem:[%s9] sm:$0x1]
          %v1089 = vlaneseq
          %v1090 = vshrl.u32 %v1089, 7
          %v1091 = vsub.s32 0, %v1090
          %v1092 = vrot.slane %v1087, %v1091
          %v1094 = vmul.f32 %v1086, %v1092
          %v1095 = vld [vmem:[%s10] sm:$0x1]
          %v1097 = vlaneseq
          %v1098 = vshrl.u32 %v1097, 7
          %v1099 = vsub.s32 0, %v1098
          %v1100 = vrot.slane %v1095, %v1099
          %v1102 = vadd.f32 %v1094, %v1100
          %1103 = vst.msk [vmem:[%s512] sm:$0xff] %vm753, %v1102
        $region76: #{tpu_custom_call.1} parent=63 // pred_fallthru
          _
        %s1104 = sand.u32 %s332, 1
        %s1105 = scalar_lea.sflag [#allocation6], %s1104
        %s1106 = sand.u32 %s332, 1
        %s1107 = smul.addr %s1106, 8
        %s1108 = scalar_lea.vmem [#allocation5], %s1107
        // Predicated region
        $region77: #{tpu_custom_call.1} parent=63 // pred_check
          %p1109 = pneg %p342
        $region78: #{tpu_custom_call.1} parent=63 // pred_check_branch
          %1111 = sbr.rel (%p1109) target = $region80
        $region79: #{tpu_custom_call.1} parent=63 // pred_region
          %s1113 = ssub.s32 128, 128
          %1114 = vsyncadd %s1105, %s1113
          %s1115 = sadd.s32 %s31, %s30
          %s1116 = smul.addr %s1115, 128
          %s1117 = scalar_lea.hbm %s11, %s1116
          %s1119 = sshll.u32 %s1108, 4
          %s1120 = int_to_ptr.vmem [resolvable:$true] %s1119
          %1122 = dma.vmem_to_hbm [thread:$0]  %s1120, 128, %s1117, %s1105
        $region80: #{tpu_custom_call.1} parent=63 // pred_fallthru
          _
      $region64: #{tpu_custom_call.1} parent=5 // pred_fallthru
        _
      %p1123 = scmp.le.s32.totalorder 2, %s20
      // Predicated region
      $region81: #{tpu_custom_call.1} parent=5 // pred_check
        %p1124 = pneg %p1123
      $region82: #{tpu_custom_call.1} parent=5 // pred_check_branch
        %1126 = sbr.rel (%p1124) target = $region84
      $region83: #{tpu_custom_call.1} parent=5 // pred_region
        %s1127 = ssub.s32 %s20, 2
        // Predicated region
        $region85: #{tpu_custom_call.1} parent=83 // pred_check
          %p1128 = pneg %p348
        $region86: #{tpu_custom_call.1} parent=83 // pred_check_branch
          %1130 = sbr.rel (%p1128) target = $region88
        $region87: #{tpu_custom_call.1} parent=83 // pred_region
          %s1131 = sand.u32 %s333, 1
          %s1132 = scalar_lea.sflag [#allocation6], %s1131
          %s1133 = sand.u32 %s333, 1
          %s1134 = smul.addr %s1133, 8
          %s1135 = scalar_lea.vmem [#allocation5], %s1134
          %1136 = dma.done %s1132, 128
        $region88: #{tpu_custom_call.1} parent=83 // pred_fallthru
          _
      $region84: #{tpu_custom_call.1} parent=5 // pred_fallthru
        _
    $region6: #{tpu_custom_call.1} parent=1 // loop_footer
      %s24 = sadd.s32 1, %s20
    $region7: #{tpu_custom_call.1} parent=1 // loop_footer_branch
      %19 = sbr.rel target = $region3
    $region8: #{tpu_custom_call.1} parent=1 // loop_exit
      _
    %1137 = vsyncpa [#allocation6], 1
    %s1138 = scalar_lea.sflag [#allocation6], 1
    %1139 = vsyncpa %s1138, 1

</llo_original>
